<compile_context>
chip_gen: v5e
topology: v5e:2x2
jax: 0.10.0
libtpu: 0.0.40
codegen_flags: <defaults>
</compile_context>

<pallas_src>
import functools

import jax
import jax.numpy as jnp
import numpy as np
from jax.experimental import pallas as pl
from jax.experimental.pallas import tpu as pltpu


# ----------------------------------------------------------------------------------------
# Pallas kernel: one program per (flow, batch, hw_tile, event_chunk).  Accumulates the
# 4-channel IWE for both warping directions into VMEM scratch across the chunk axis and, on
# the last chunk, writes one lane-dense (1,128) row holding [num_fw, nz_fw, num_bw, nz_bw].
# ----------------------------------------------------------------------------------------
def _deblur_partials_kernel(idx_fw_ref, ch_fw_ref, idx_bw_ref, ch_bw_ref,
                            out_ref, acc_fw_ref, acc_bw_ref,
                            *, hw_tile, inv_max_ts, single_cast, approx_recip):
    t = pl.program_id(2)                       # HW-tile index
    c = pl.program_id(3)                       # event-chunk index (innermost, reduction axis)

    @pl.when(c == 0)
    def _init():
        acc_fw_ref[...] = jnp.zeros_like(acc_fw_ref)
        acc_bw_ref[...] = jnp.zeros_like(acc_bw_ref)

    # Single lane-row iota shared by both warping directions; the compare broadcasts it
    # against the (CHUNK, 1) index column, so no full-size iota is materialized per chunk.
    pix = jax.lax.broadcasted_iota(jnp.int32, (1, hw_tile), 1)
    hw_off = t * hw_tile

    def scatter_accumulate(idx_ref, ch_ref, acc_ref):
        # idx: (CHUNK, 1) linear pixel index per event.  Out-of-bounds / padded events carry
        # index 0 with weight 0, so they contribute exactly 0.0 (matches the reference).
        idx_local = idx_ref[...] - hw_off                                  # (CHUNK, 1) int32
        hit = idx_local == pix                                             # (CHUNK, HW_TILE)
        if single_cast:
            onehot = hit.astype(jnp.bfloat16)                              # v6e/v7x bf16 VALU
        else:
            onehot = hit.astype(jnp.float32).astype(jnp.bfloat16)          # v5e: no bf16 VALU
        acc_ref[...] += jnp.dot(ch_ref[...], onehot,                       # (4,CHUNK)@(CHUNK,HW)
                                preferred_element_type=jnp.float32)

    scatter_accumulate(idx_fw_ref, ch_fw_ref, acc_fw_ref)
    scatter_accumulate(idx_bw_ref, ch_bw_ref, acc_bw_ref)

    @pl.when(c == pl.num_programs(3) - 1)
    def _finalize():
        def partials(acc_ref):
            iwe = acc_ref[...]                                             # (4, HW_TILE) f32
            pos, neg = iwe[0:1, :], iwe[1:2, :]
            if approx_recip:
                inv_pos = pl.reciprocal(pos + 1e-9, approx=True)
                inv_neg = pl.reciprocal(neg + 1e-9, approx=True)
            else:
                inv_pos = 1.0 / (pos + 1e-9)
                inv_neg = 1.0 / (neg + 1e-9)
            pos_ts = iwe[2:3, :] * inv_pos * inv_max_ts
            neg_ts = iwe[3:4, :] * inv_neg * inv_max_ts
            num = jnp.sum(pos_ts * pos_ts) + jnp.sum(neg_ts * neg_ts)
            nz = jnp.sum(((pos + neg) != 0.0).astype(jnp.float32))
            return num, nz

        num_fw, nz_fw = partials(acc_fw_ref)
        num_bw, nz_bw = partials(acc_bw_ref)

        # Pack the 4 scalars into one lane-dense (1, 128) row -> single unmasked store.
        lane = jax.lax.broadcasted_iota(jnp.int32, (1, 128), 1)
        row = jnp.zeros((1, 128), jnp.float32)
        for i, v in enumerate((num_fw, nz_fw, num_bw, nz_bw)):
            row = row + jnp.where(lane == i, jnp.reshape(v, (1, 1)), 0.0)
        out_ref[...] = row


def _round_up(x, m):
    return ((x + m - 1) // m) * m


def _pick_config(hw):
    """Generation-aware sizing based on jax device_kind (robust, no pltpu introspection)."""
    try:
        kind = jax.devices()[0].device_kind.lower()
    except Exception:
        kind = ""
    is_v5 = "v5" in kind
    is_v7 = "v7" in kind
    if is_v7:
        vmem_limit = 40 << 20          # 64 MiB VMEM / TC -> leave headroom
    elif is_v5:
        vmem_limit = 96 << 20          # 128 MiB physical; two-step cast needs more scratch
    else:
        vmem_limit = 64 << 20          # v6e (or unknown, assumed v6e-like)
    hw_tile = min(4096, _round_up(hw, 128))
    single_cast = not is_v5            # v5e has no bf16 VALU -> keep bool->f32->bf16 there
    return hw_tile, vmem_limit, single_cast, is_v7


def deblur_losses_pallas(idx_fw, ch_fw, idx_bw, ch_bw, *, res, max_ts,
                         loss_scaling=True, approx_recip=True):
    """idx_*: [L, B, M] int32, ch_*: [L, B, 4, M] f32  ->  per-(flow, batch) loss [L, B] f32."""
    L, B, M = idx_fw.shape
    HW = res[0] * res[1]
    inv_max_ts = 1.0 / float(max_ts)

    hw_tile, vmem_limit, single_cast, is_v7 = _pick_config(HW)
    num_hw_tiles = -(-HW // hw_tile)
    # v7x has two TensorCores: guarantee >= 2 parallel grid units when possible.
    if is_v7 and L * B * num_hw_tiles < 2 and HW > 128:
        hw_tile = _round_up(-(-HW // 2), 128)
        num_hw_tiles = -(-HW // hw_tile)

    chunk = min(1024, _round_up(max(M, 1), 128))

    def run(cfg):
        chunk_, hw_tile_, single_cast_, vmem_limit_ = cfg
        num_hw_tiles_ = -(-HW // hw_tile_)
        m_pad = _round_up(M, chunk_)
        num_chunks = m_pad // chunk_
        pad = m_pad - M

        ifw, ibw, cfw, cbw = idx_fw, idx_bw, ch_fw, ch_bw
        if pad:
            ifw = jnp.pad(ifw, ((0, 0), (0, 0), (0, pad)))         # padded events: idx 0
            ibw = jnp.pad(ibw, ((0, 0), (0, 0), (0, pad)))
            cfw = jnp.pad(cfw, ((0, 0), (0, 0), (0, 0), (0, pad)))  # padded events: weight 0
            cbw = jnp.pad(cbw, ((0, 0), (0, 0), (0, 0), (0, pad)))
        ifw = ifw[..., None]                    # [L, B, M_pad, 1], chunk-blocked via the grid
        ibw = ibw[..., None]
        cfw = cfw.astype(jnp.bfloat16)          # bf16 weights, f32 MXU accumulation
        cbw = cbw.astype(jnp.bfloat16)

        kernel = functools.partial(_deblur_partials_kernel, hw_tile=hw_tile_,
                                   inv_max_ts=inv_max_ts, single_cast=single_cast_,
                                   approx_recip=approx_recip)

        out_shape = jax.ShapeDtypeStruct((L, B, num_hw_tiles_, 1, 128), jnp.float32)
        cost = pl.CostEstimate(
            flops=2 * 2 * 4 * m_pad * hw_tile_ * num_hw_tiles_ * L * B,
            transcendentals=4 * hw_tile_ * num_hw_tiles_ * L * B,
            bytes_accessed=num_hw_tiles_ * L * B * (2 * m_pad * 4 + 2 * 4 * m_pad * 2)
            + L * B * num_hw_tiles_ * 512,
        )

        return pl.pallas_call(
            kernel,
            out_shape=out_shape,
            grid_spec=pltpu.PrefetchScalarGridSpec(
                num_scalar_prefetch=0,
                grid=(L, B, num_hw_tiles_, num_chunks),
                in_specs=[
                    pl.BlockSpec((None, None, chunk_, 1), lambda l, b, t, c: (l, b, c, 0)),
                    pl.BlockSpec((None, None, 4, chunk_), lambda l, b, t, c: (l, b, 0, c)),
                    pl.BlockSpec((None, None, chunk_, 1), lambda l, b, t, c: (l, b, c, 0)),
                    pl.BlockSpec((None, None, 4, chunk_), lambda l, b, t, c: (l, b, 0, c)),
                ],
                out_specs=pl.BlockSpec((None, None, None, 1, 128),
                                       lambda l, b, t, c: (l, b, t, 0, 0)),
                scratch_shapes=[pltpu.VMEM((4, hw_tile_), jnp.float32),
                                pltpu.VMEM((4, hw_tile_), jnp.float32)],
            ),
            compiler_params=pltpu.CompilerParams(
                dimension_semantics=("parallel", "parallel", "parallel", "arbitrary"),
                vmem_limit_bytes=vmem_limit_),
            cost_estimate=cost,
        )(ifw, cfw, ibw, cbw)

    primary = (chunk, hw_tile, single_cast, vmem_limit)
    try:
        outs = run(primary)
    except Exception:
        # Conservative retry: two-step cast, smaller tiles (covers lowering / VMEM surprises).
        fallback = (min(chunk, 512), min(hw_tile, 2048), False, 48 << 20)
        if fallback == primary:
            raise
        outs = run(fallback)

    parts = outs[:, :, :, 0, :]                           # [L, B, T, 128]
    num_fw = parts[..., 0].sum(axis=2)
    nz_fw = parts[..., 1].sum(axis=2)
    num_bw = parts[..., 2].sum(axis=2)
    nz_bw = parts[..., 3].sum(axis=2)
    if loss_scaling:
        return num_fw / (nz_fw + 1e-9) + num_bw / (nz_bw + 1e-9)
    return num_fw + num_bw


# ----------------------------------------------------------------------------------------
# Plain-JAX glue reproducing the PyTorch module semantics (get_interpolation, state, etc.)
# ----------------------------------------------------------------------------------------
def get_interpolation(event_list, flow, tref, res):
    """event_list [B, NE, 4] (ts, y, x, p); flow [B, NE, 2] (fy, fx) -> idx [B, 4NE], w [B, 4NE]."""
    warped = event_list[:, :, 1:3] + (tref - event_list[:, :, 0:1]) * flow   # (y, x)

    top_y = jnp.floor(warped[:, :, 0:1])
    bot_y = jnp.floor(warped[:, :, 0:1] + 1.0)
    left_x = jnp.floor(warped[:, :, 1:2])
    right_x = jnp.floor(warped[:, :, 1:2] + 1.0)

    tl = jnp.concatenate([top_y, left_x], axis=2)
    tr = jnp.concatenate([top_y, right_x], axis=2)
    bl = jnp.concatenate([bot_y, left_x], axis=2)
    br = jnp.concatenate([bot_y, right_x], axis=2)
    idx = jnp.concatenate([tl, tr, bl, br], axis=1)                          # [B, 4NE, 2]

    warped4 = jnp.concatenate([warped] * 4, axis=1)
    weights = jnp.maximum(jnp.zeros_like(warped4), 1.0 - jnp.abs(warped4 - idx))

    mask = ((idx[:, :, 0:1] >= 0) & (idx[:, :, 0:1] < res[0]) &
            (idx[:, :, 1:2] >= 0) & (idx[:, :, 1:2] < res[1])).astype(idx.dtype)
    idx = idx * mask
    weights = jnp.prod(weights, axis=-1, keepdims=True) * mask

    lin_idx = idx[:, :, 0] * res[1] + idx[:, :, 1]                           # row-major
    return lin_idx.astype(jnp.int32), weights[:, :, 0]


def build_channels(weights, pol4, ts4):
    """weights [B, M], pol4 [B, M, 2], ts4 [B, M] -> [B, 4, M] (pos, neg, ts*pos, ts*neg)."""
    return jnp.stack([weights * pol4[:, :, 0],
                      weights * pol4[:, :, 1],
                      weights * ts4 * pol4[:, :, 0],
                      weights * ts4 * pol4[:, :, 1]], axis=1).astype(jnp.float32)


def flow_smoothing(vector_list, flow_temp_reg):
    """Scaled Charbonnier smoothness prior on the flow vectors. vector_list [B, K, 8]."""
    B, K, _ = vector_list.shape
    if K == 0:
        return jnp.float32(0.0)
    flow_dt = vector_list[:, :-1, :] - vector_list[:, 1:, :]
    flow_dt = jnp.sqrt(flow_dt ** 2 + 1e-9).reshape(B, -1)
    if flow_dt.shape[1] > 0:
        flow_dt = jnp.mean(flow_dt, axis=1)
    return jnp.sum(flow_temp_reg * flow_dt)


def event_warping_forward(event_list, flow_lists, pol_mask_list, vector_list, *,
                          res, passes, flow_temp_reg, loss_scaling=True):
    """Equivalent of EventWarping.forward() with the hot path in the Pallas kernel."""
    max_ts = float(passes)
    pol4 = jnp.concatenate([pol_mask_list] * 4, axis=1)                      # [B, 4NE, 2]
    ts4 = jnp.concatenate([event_list[:, :, 0:1]] * 4, axis=1)[:, :, 0]      # [B, 4NE]

    idx_fw_l, ch_fw_l, idx_bw_l, ch_bw_l = [], [], [], []
    for flow in flow_lists:
        fw_idx, fw_w = get_interpolation(event_list, flow, max_ts, res)
        bw_idx, bw_w = get_interpolation(event_list, flow, 0.0, res)
        idx_fw_l.append(fw_idx)
        ch_fw_l.append(build_channels(fw_w, pol4, ts4))
        idx_bw_l.append(bw_idx)
        ch_bw_l.append(build_channels(bw_w, pol4, max_ts - ts4))

    idx_fw = jnp.stack(idx_fw_l)
    ch_fw = jnp.stack(ch_fw_l)
    idx_bw = jnp.stack(idx_bw_l)
    ch_bw = jnp.stack(ch_bw_l)

    per_flow_batch = deblur_losses_pallas(idx_fw, ch_fw, idx_bw, ch_bw,
                                          res=res, max_ts=max_ts, loss_scaling=loss_scaling)
    loss = jnp.sum(per_flow_batch) / len(flow_lists)
    # TODO(synk): flow_smoothing is a tiny [B, K-1, 8] elementwise op; left in plain JAX glue.
    return loss + flow_smoothing(vector_list, flow_temp_reg)


# ----------------------------------------------------------------------------------------
# Pure-JAX reference (direct scatter_add) used only for verification
# ----------------------------------------------------------------------------------------
def _interpolate_ref(idx, weights, res):
    HW = res[0] * res[1]
    return jax.vmap(lambda i, w: jnp.zeros((HW,), jnp.float32).at[i].add(w))(idx, weights)


def _event_deblurring_ref(max_ts, event_list, flow, pol4, ts4, res, loss_scaling):
    def scale_loss(iwe, iwe_ts):
        loss = jnp.sum(iwe_ts[:, 0, :] ** 2, axis=1) + jnp.sum(iwe_ts[:, 1, :] ** 2, axis=1)
        if loss_scaling:
            nz = (jnp.sum(iwe, axis=1) != 0).astype(jnp.float32)
            loss = loss / (jnp.sum(nz, axis=1) + 1e-9)
        return jnp.sum(loss)

    total = 0.0
    for tref, tsw in [(max_ts, ts4), (0.0, max_ts - ts4)]:
        idx, w = get_interpolation(event_list, flow, tref, res)
        pos = _interpolate_ref(idx, w * pol4[:, :, 0], res)
        neg = _interpolate_ref(idx, w * pol4[:, :, 1], res)
        pos_ts = _interpolate_ref(idx, w * tsw * pol4[:, :, 0], res) / (pos + 1e-9) / max_ts
        neg_ts = _interpolate_ref(idx, w * tsw * pol4[:, :, 1], res) / (neg + 1e-9) / max_ts
        total = total + scale_loss(jnp.stack([pos, neg], axis=1),
                                   jnp.stack([pos_ts, neg_ts], axis=1))
    return total


def reference_forward(event_list, flow_lists, pol_mask_list, vector_list, *,
                      res, passes, flow_temp_reg, loss_scaling=True):
    max_ts = float(passes)
    pol4 = jnp.concatenate([pol_mask_list] * 4, axis=1)
    ts4 = jnp.concatenate([event_list[:, :, 0:1]] * 4, axis=1)[:, :, 0]
    loss = 0.0
    for flow in flow_lists:
        loss = loss + _event_deblurring_ref(max_ts, event_list, flow, pol4, ts4, res, loss_scaling)
    loss = loss / len(flow_lists)
    return loss + flow_smoothing(vector_list, flow_temp_reg)


# ----------------------------------------------------------------------------------------
# State construction (emulates K calls to EventWarping.update_flow_loss)
# ----------------------------------------------------------------------------------------
def simulate_state(key, B, N, res, K, L):
    H, W = res
    event_list = flow_lists = pol_mask_list = vector_list = None
    for p in range(K):
        key, k1, k2, k3, k4, k5, k6 = jax.random.split(key, 7)
        ts = jax.random.uniform(k1, (B, N, 1), jnp.float32)
        ys = jax.random.randint(k2, (B, N, 1), 0, H).astype(jnp.float32)
        xs = jax.random.randint(k3, (B, N, 1), 0, W).astype(jnp.float32)
        pol = jnp.where(jax.random.bernoulli(k4, 0.5, (B, N, 1)), 1.0, -1.0)
        events = jnp.concatenate([ts, ys, xs, pol], axis=2)                  # [B, N, 4]
        pol_mask = jnp.concatenate([(pol > 0).astype(jnp.float32),
                                    (pol <= 0).astype(jnp.float32)], axis=2)  # [B, N, 2]
        flow_maps = [jax.random.uniform(jax.random.fold_in(k5, i), (B, 2, H, W),
                                        minval=-3.0, maxval=3.0) for i in range(L)]
        vector = jax.random.normal(k6, (B, 8, 1, 1), jnp.float32)

        # --- update_flow_loss semantics ---
        flow_idx = jnp.round(events[:, :, 1:3])
        flow_idx = flow_idx.at[:, :, 0].multiply(W)
        flow_idx = jnp.sum(flow_idx, axis=2).astype(jnp.int32)               # y*W + x
        pass_flows = []
        for fm in flow_maps:
            ff = fm.reshape(B, 2, -1)
            efy = jnp.take_along_axis(ff[:, 1, :], flow_idx, axis=1)[..., None]
            efx = jnp.take_along_axis(ff[:, 0, :], flow_idx, axis=1)[..., None]
            pass_flows.append(jnp.concatenate([efy, efx], axis=2))           # [B, N, 2] (fy, fx)
        vec_flat = vector.reshape(B, 1, 8)
        events = events.at[:, :, 0:1].add(float(p))                          # ts offset per pass

        if event_list is None:
            event_list, pol_mask_list = events, pol_mask
            flow_lists, vector_list = pass_flows, vec_flat
        else:
            event_list = jnp.concatenate([event_list, events], axis=1)
            pol_mask_list = jnp.concatenate([pol_mask_list, pol_mask], axis=1)
            flow_lists = [jnp.concatenate([a, b], axis=1) for a, b in zip(flow_lists, pass_flows)]
            vector_list = jnp.concatenate([vector_list, vec_flat], axis=1)
    return event_list, flow_lists, pol_mask_list, vector_list


if __name__ == "__main__":
    # config: resolution (H, W), batch_size, flow_temp_reg — no learned parameters in __init__.
    B, N, K, L = 2, 8, 2, 2          # batch, events per pass, passes, flow maps per pass
    H = W = 16
    res = (H, W)
    flow_temp_reg = 0.1

    key = jax.random.PRNGKey(0)
    event_list, flow_lists, pol_mask_list, vector_list = simulate_state(key, B, N, res, K, L)

    loss = event_warping_forward(event_list, flow_lists, pol_mask_list, vector_list,
                                 res=res, passes=K, flow_temp_reg=flow_temp_reg,
                                 loss_scaling=True)
    loss = jax.block_until_ready(loss)

    ref = reference_forward(event_list, flow_lists, pol_mask_list, vector_list,
                            res=res, passes=K, flow_temp_reg=flow_temp_reg,
                            loss_scaling=True)
    ref = jax.block_until_ready(ref)

    assert np.isfinite(float(loss)), f"non-finite loss: {loss}"
    np.testing.assert_allclose(float(loss), float(ref), rtol=2e-2, atol=1e-5)
    print("KERNEL_OK")
</pallas_src>

<mosaic_0001>
module attributes {stable_mosaic.version = 11 : i64} {
  func.func @_deblur_partials_kernel(%arg0: i32, %arg1: i32, %arg2: i32, %arg3: i32, %arg4: memref<1x1x128x1xi32, #tpu.memory_space<vmem>>, %arg5: memref<1x1x4x128xbf16, #tpu.memory_space<vmem>>, %arg6: memref<1x1x128x1xi32, #tpu.memory_space<vmem>>, %arg7: memref<1x1x4x128xbf16, #tpu.memory_space<vmem>>, %arg8: memref<1x1x1x1x128xf32, #tpu.memory_space<vmem>>, %arg9: memref<4x256xf32, #tpu.memory_space<vmem>>, %arg10: memref<4x256xf32, #tpu.memory_space<vmem>>) attributes {dimension_semantics = [#tpu.dimension_semantics<parallel>, #tpu.dimension_semantics<parallel>, #tpu.dimension_semantics<parallel>, #tpu.dimension_semantics<arbitrary>], iteration_bounds = array<i64: 2, 2, 1, 1>, scalar_prefetch = 0 : i64, scratch_operands = 2 : i64, tpu.core_type = #tpu.core_type<tc>, window_params = [{transform_indices = @transform_0, window_bounds = array<i64: 1, 1, 128, 1>}, {transform_indices = @transform_1, window_bounds = array<i64: 1, 1, 4, 128>}, {transform_indices = @transform_2, window_bounds = array<i64: 1, 1, 128, 1>}, {transform_indices = @transform_3, window_bounds = array<i64: 1, 1, 4, 128>}, {transform_indices = @transform_4, window_bounds = array<i64: 1, 1, 1, 1, 128>}]} {
    %c0_i32 = arith.constant 0 : i32
    %0 = arith.cmpi eq, %arg3, %c0_i32 : i32
    %1 = arith.extui %0 : i1 to i32
    %c0_i32_0 = arith.constant 0 : i32
    %2 = arith.cmpi ne, %1, %c0_i32_0 : i32
    scf.if %2 {
      %cst_27 = arith.constant 0.000000e+00 : f32
      %40 = vector.broadcast %cst_27 : f32 to vector<4x256xf32>
      %c0_28 = arith.constant 0 : index
      %c0_29 = arith.constant 0 : index
      %41 = vector.load %arg9[%c0_28, %c0_29] : memref<4x256xf32, #tpu.memory_space<vmem>>, vector<4x256xf32>
      tpu.vector_store %arg9[%c0_28, %c0_29], %40 {strides = array<i32>} : memref<4x256xf32, #tpu.memory_space<vmem>>, vector<4x256xf32>,
      %cst_30 = arith.constant 0.000000e+00 : f32
      %42 = vector.broadcast %cst_30 : f32 to vector<4x256xf32>
      %c0_31 = arith.constant 0 : index
      %c0_32 = arith.constant 0 : index
      %43 = vector.load %arg10[%c0_31, %c0_32] : memref<4x256xf32, #tpu.memory_space<vmem>>, vector<4x256xf32>
      tpu.vector_store %arg10[%c0_31, %c0_32], %42 {strides = array<i32>} : memref<4x256xf32, #tpu.memory_space<vmem>>, vector<4x256xf32>,
    } else {
    }
    %3 = tpu.iota {dimensions = array<i32: 1>} : vector<1x256xi32>
    %c256_i32 = arith.constant 256 : i32
    %4 = arith.muli %arg2, %c256_i32 : i32
    %c0 = arith.constant 0 : index
    %c0_1 = arith.constant 0 : index
    %c0_2 = arith.constant 0 : index
    %c0_3 = arith.constant 0 : index
    %5 = vector.load %arg4[%c0, %c0_1, %c0_2, %c0_3] : memref<1x1x128x1xi32, #tpu.memory_space<vmem>>, vector<1x1x128x1xi32>
    %6 = vector.shape_cast %5 : vector<1x1x128x1xi32> to vector<128x1xi32>
    %7 = vector.broadcast %4 : i32 to vector<128x1xi32>
    %8 = arith.subi %6, %7 : vector<128x1xi32>
    %9 = vector.broadcast %8 : vector<128x1xi32> to vector<128x256xi32>
    %10 = vector.broadcast %3 : vector<1x256xi32> to vector<128x256xi32>
    %11 = arith.cmpi eq, %9, %10 : vector<128x256xi32>
    %12 = arith.extui %11 : vector<128x256xi1> to vector<128x256xi32>
    %13 = arith.sitofp %12 : vector<128x256xi32> to vector<128x256xf32>
    %14 = arith.truncf %13 : vector<128x256xf32> to vector<128x256xbf16>
    %c0_4 = arith.constant 0 : index
    %c0_5 = arith.constant 0 : index
    %15 = vector.load %arg9[%c0_4, %c0_5] : memref<4x256xf32, #tpu.memory_space<vmem>>, vector<4x256xf32>
    %c0_6 = arith.constant 0 : index
    %c0_7 = arith.constant 0 : index
    %c0_8 = arith.constant 0 : index
    %c0_9 = arith.constant 0 : index
    %16 = vector.load %arg5[%c0_6, %c0_7, %c0_8, %c0_9] : memref<1x1x4x128xbf16, #tpu.memory_space<vmem>>, vector<1x1x4x128xbf16>
    %17 = vector.shape_cast %16 : vector<1x1x4x128xbf16> to vector<4x128xbf16>
    %cst = arith.constant dense<0.000000e+00> : vector<4x256xf32>
    %18 = tpu.matmul %17, %14, %cst {dimension_numbers = #tpu.dot_dimension_numbers<[1], [0], [0], [1], [0, 0, 1, 1], [], []>} : vector<4x128xbf16>, vector<128x256xbf16>, vector<4x256xf32> -> vector<4x256xf32>
    %19 = arith.addf %15, %18 : vector<4x256xf32>
    %c0_10 = arith.constant 0 : index
    %c0_11 = arith.constant 0 : index
    %20 = vector.load %arg9[%c0_10, %c0_11] : memref<4x256xf32, #tpu.memory_space<vmem>>, vector<4x256xf32>
    tpu.vector_store %arg9[%c0_10, %c0_11], %19 {strides = array<i32>} : memref<4x256xf32, #tpu.memory_space<vmem>>, vector<4x256xf32>,
    %c0_12 = arith.constant 0 : index
    %c0_13 = arith.constant 0 : index
    %c0_14 = arith.constant 0 : index
    %c0_15 = arith.constant 0 : index
    %21 = vector.load %arg6[%c0_12, %c0_13, %c0_14, %c0_15] : memref<1x1x128x1xi32, #tpu.memory_space<vmem>>, vector<1x1x128x1xi32>
    %22 = vector.shape_cast %21 : vector<1x1x128x1xi32> to vector<128x1xi32>
    %23 = vector.broadcast %4 : i32 to vector<128x1xi32>
    %24 = arith.subi %22, %23 : vector<128x1xi32>
    %25 = vector.broadcast %24 : vector<128x1xi32> to vector<128x256xi32>
    %26 = vector.broadcast %3 : vector<1x256xi32> to vector<128x256xi32>
    %27 = arith.cmpi eq, %25, %26 : vector<128x256xi32>
    %28 = arith.extui %27 : vector<128x256xi1> to vector<128x256xi32>
    %29 = arith.sitofp %28 : vector<128x256xi32> to vector<128x256xf32>
    %30 = arith.truncf %29 : vector<128x256xf32> to vector<128x256xbf16>
    %c0_16 = arith.constant 0 : index
    %c0_17 = arith.constant 0 : index
    %31 = vector.load %arg10[%c0_16, %c0_17] : memref<4x256xf32, #tpu.memory_space<vmem>>, vector<4x256xf32>
    %c0_18 = arith.constant 0 : index
    %c0_19 = arith.constant 0 : index
    %c0_20 = arith.constant 0 : index
    %c0_21 = arith.constant 0 : index
    %32 = vector.load %arg7[%c0_18, %c0_19, %c0_20, %c0_21] : memref<1x1x4x128xbf16, #tpu.memory_space<vmem>>, vector<1x1x4x128xbf16>
    %33 = vector.shape_cast %32 : vector<1x1x4x128xbf16> to vector<4x128xbf16>
    %cst_22 = arith.constant dense<0.000000e+00> : vector<4x256xf32>
    %34 = tpu.matmul %33, %30, %cst_22 {dimension_numbers = #tpu.dot_dimension_numbers<[1], [0], [0], [1], [0, 0, 1, 1], [], []>} : vector<4x128xbf16>, vector<128x256xbf16>, vector<4x256xf32> -> vector<4x256xf32>
    %35 = arith.addf %31, %34 : vector<4x256xf32>
    %c0_23 = arith.constant 0 : index
    %c0_24 = arith.constant 0 : index
    %36 = vector.load %arg10[%c0_23, %c0_24] : memref<4x256xf32, #tpu.memory_space<vmem>>, vector<4x256xf32>
    tpu.vector_store %arg10[%c0_23, %c0_24], %35 {strides = array<i32>} : memref<4x256xf32, #tpu.memory_space<vmem>>, vector<4x256xf32>,
    %c0_i32_25 = arith.constant 0 : i32
    %37 = arith.cmpi eq, %arg3, %c0_i32_25 : i32
    %38 = arith.extui %37 : i1 to i32
    %c0_i32_26 = arith.constant 0 : i32
    %39 = arith.cmpi ne, %38, %c0_i32_26 : i32
    scf.if %39 {
      %c0_27 = arith.constant 0 : index
      %c0_28 = arith.constant 0 : index
      %40 = vector.load %arg9[%c0_27, %c0_28] : memref<4x256xf32, #tpu.memory_space<vmem>>, vector<4x256xf32>
      %41 = vector.extract_strided_slice %40 {offsets = [0, 0], sizes = [1, 256], strides = [1, 1]} : vector<4x256xf32> to vector<1x256xf32>
      %42 = vector.extract_strided_slice %40 {offsets = [1, 0], sizes = [1, 256], strides = [1, 1]} : vector<4x256xf32> to vector<1x256xf32>
      %cst_29 = arith.constant 9.99999971E-10 : f32
      %43 = vector.broadcast %cst_29 : f32 to vector<1x256xf32>
      %44 = arith.addf %41, %43 : vector<1x256xf32>
      %45 = tpu.reciprocal %44 {approx = true} : vector<1x256xf32> -> vector<1x256xf32>
      %cst_30 = arith.constant 9.99999971E-10 : f32
      %46 = vector.broadcast %cst_30 : f32 to vector<1x256xf32>
      %47 = arith.addf %42, %46 : vector<1x256xf32>
      %48 = tpu.reciprocal %47 {approx = true} : vector<1x256xf32> -> vector<1x256xf32>
      %49 = vector.extract_strided_slice %40 {offsets = [2, 0], sizes = [1, 256], strides = [1, 1]} : vector<4x256xf32> to vector<1x256xf32>
      %50 = arith.mulf %49, %45 : vector<1x256xf32>
      %cst_31 = arith.constant 5.000000e-01 : f32
      %51 = vector.broadcast %cst_31 : f32 to vector<1x256xf32>
      %52 = arith.mulf %50, %51 : vector<1x256xf32>
      %53 = vector.extract_strided_slice %40 {offsets = [3, 0], sizes = [1, 256], strides = [1, 1]} : vector<4x256xf32> to vector<1x256xf32>
      %54 = arith.mulf %53, %48 : vector<1x256xf32>
      %cst_32 = arith.constant 5.000000e-01 : f32
      %55 = vector.broadcast %cst_32 : f32 to vector<1x256xf32>
      %56 = arith.mulf %54, %55 : vector<1x256xf32>
      %57 = arith.mulf %52, %52 : vector<1x256xf32>
      %58 = vector.shape_cast %57 : vector<1x256xf32> to vector<1x1x256xf32>
      %cst_33 = arith.constant dense<0.000000e+00> : vector<1xf32>
      %59 = vector.multi_reduction <add>, %58, %cst_33 [1, 2] : vector<1x1x256xf32> to vector<1xf32>
      %60 = vector.shape_cast %59 : vector<1xf32> to vector<1x1x1xf32>
      %61 = vector.extract %60[0, 0, 0] : f32 from vector<1x1x1xf32>
      %62 = arith.mulf %56, %56 : vector<1x256xf32>
      %63 = vector.shape_cast %62 : vector<1x256xf32> to vector<1x1x256xf32>
      %cst_34 = arith.constant dense<0.000000e+00> : vector<1xf32>
      %64 = vector.multi_reduction <add>, %63, %cst_34 [1, 2] : vector<1x1x256xf32> to vector<1xf32>
      %65 = vector.shape_cast %64 : vector<1xf32> to vector<1x1x1xf32>
      %66 = vector.extract %65[0, 0, 0] : f32 from vector<1x1x1xf32>
      %67 = arith.addf %61, %66 : f32
      %68 = arith.addf %41, %42 : vector<1x256xf32>
      %cst_35 = arith.constant 0.000000e+00 : f32
      %69 = vector.broadcast %cst_35 : f32 to vector<1x256xf32>
      %70 = arith.cmpf one, %68, %69 : vector<1x256xf32>
      %71 = arith.extui %70 : vector<1x256xi1> to vector<1x256xi32>
      %72 = arith.sitofp %71 : vector<1x256xi32> to vector<1x256xf32>
      %73 = vector.shape_cast %72 : vector<1x256xf32> to vector<1x1x256xf32>
      %cst_36 = arith.constant dense<0.000000e+00> : vector<1xf32>
      %74 = vector.multi_reduction <add>, %73, %cst_36 [1, 2] : vector<1x1x256xf32> to vector<1xf32>
      %75 = vector.shape_cast %74 : vector<1xf32> to vector<1x1x1xf32>
      %76 = vector.extract %75[0, 0, 0] : f32 from vector<1x1x1xf32>
      %c0_37 = arith.constant 0 : index
      %c0_38 = arith.constant 0 : index
      %77 = vector.load %arg10[%c0_37, %c0_38] : memref<4x256xf32, #tpu.memory_space<vmem>>, vector<4x256xf32>
      %78 = vector.extract_strided_slice %77 {offsets = [0, 0], sizes = [1, 256], strides = [1, 1]} : vector<4x256xf32> to vector<1x256xf32>
      %79 = vector.extract_strided_slice %77 {offsets = [1, 0], sizes = [1, 256], strides = [1, 1]} : vector<4x256xf32> to vector<1x256xf32>
      %cst_39 = arith.constant 9.99999971E-10 : f32
      %80 = vector.broadcast %cst_39 : f32 to vector<1x256xf32>
      %81 = arith.addf %78, %80 : vector<1x256xf32>
      %82 = tpu.reciprocal %81 {approx = true} : vector<1x256xf32> -> vector<1x256xf32>
      %cst_40 = arith.constant 9.99999971E-10 : f32
      %83 = vector.broadcast %cst_40 : f32 to vector<1x256xf32>
      %84 = arith.addf %79, %83 : vector<1x256xf32>
      %85 = tpu.reciprocal %84 {approx = true} : vector<1x256xf32> -> vector<1x256xf32>
      %86 = vector.extract_strided_slice %77 {offsets = [2, 0], sizes = [1, 256], strides = [1, 1]} : vector<4x256xf32> to vector<1x256xf32>
      %87 = arith.mulf %86, %82 : vector<1x256xf32>
      %cst_41 = arith.constant 5.000000e-01 : f32
      %88 = vector.broadcast %cst_41 : f32 to vector<1x256xf32>
      %89 = arith.mulf %87, %88 : vector<1x256xf32>
      %90 = vector.extract_strided_slice %77 {offsets = [3, 0], sizes = [1, 256], strides = [1, 1]} : vector<4x256xf32> to vector<1x256xf32>
      %91 = arith.mulf %90, %85 : vector<1x256xf32>
      %cst_42 = arith.constant 5.000000e-01 : f32
      %92 = vector.broadcast %cst_42 : f32 to vector<1x256xf32>
      %93 = arith.mulf %91, %92 : vector<1x256xf32>
      %94 = arith.mulf %89, %89 : vector<1x256xf32>
      %95 = vector.shape_cast %94 : vector<1x256xf32> to vector<1x1x256xf32>
      %cst_43 = arith.constant dense<0.000000e+00> : vector<1xf32>
      %96 = vector.multi_reduction <add>, %95, %cst_43 [1, 2] : vector<1x1x256xf32> to vector<1xf32>
      %97 = vector.shape_cast %96 : vector<1xf32> to vector<1x1x1xf32>
      %98 = vector.extract %97[0, 0, 0] : f32 from vector<1x1x1xf32>
      %99 = arith.mulf %93, %93 : vector<1x256xf32>
      %100 = vector.shape_cast %99 : vector<1x256xf32> to vector<1x1x256xf32>
      %cst_44 = arith.constant dense<0.000000e+00> : vector<1xf32>
      %101 = vector.multi_reduction <add>, %100, %cst_44 [1, 2] : vector<1x1x256xf32> to vector<1xf32>
      %102 = vector.shape_cast %101 : vector<1xf32> to vector<1x1x1xf32>
      %103 = vector.extract %102[0, 0, 0] : f32 from vector<1x1x1xf32>
      %104 = arith.addf %98, %103 : f32
      %105 = arith.addf %78, %79 : vector<1x256xf32>
      %cst_45 = arith.constant 0.000000e+00 : f32
      %106 = vector.broadcast %cst_45 : f32 to vector<1x256xf32>
      %107 = arith.cmpf one, %105, %106 : vector<1x256xf32>
      %108 = arith.extui %107 : vector<1x256xi1> to vector<1x256xi32>
      %109 = arith.sitofp %108 : vector<1x256xi32> to vector<1x256xf32>
      %110 = vector.shape_cast %109 : vector<1x256xf32> to vector<1x1x256xf32>
      %cst_46 = arith.constant dense<0.000000e+00> : vector<1xf32>
      %111 = vector.multi_reduction <add>, %110, %cst_46 [1, 2] : vector<1x1x256xf32> to vector<1xf32>
      %112 = vector.shape_cast %111 : vector<1xf32> to vector<1x1x1xf32>
      %113 = vector.extract %112[0, 0, 0] : f32 from vector<1x1x1xf32>
      %114 = tpu.iota {dimensions = array<i32: 1>} : vector<1x128xi32>
      %cst_47 = arith.constant 0.000000e+00 : f32
      %115 = vector.broadcast %cst_47 : f32 to vector<1x128xf32>
      %c0_i32_48 = arith.constant 0 : i32
      %116 = vector.broadcast %c0_i32_48 : i32 to vector<1x128xi32>
      %117 = arith.cmpi eq, %114, %116 : vector<1x128xi32>
      %118 = vector.broadcast %67 : f32 to vector<1x1xf32>
      %cst_49 = arith.constant 0.000000e+00 : f32
      %119 = vector.shape_cast %118 : vector<1x1xf32> to vector<1x1xf32>
      %120 = vector.broadcast %119 : vector<1x1xf32> to vector<1x128xf32>
      %121 = vector.broadcast %cst_49 : f32 to vector<1x128xf32>
      %122 = arith.select %117, %120, %121 : vector<1x128xi1>, vector<1x128xf32>
      %123 = arith.addf %115, %122 : vector<1x128xf32>
      %c1_i32 = arith.constant 1 : i32
      %124 = vector.broadcast %c1_i32 : i32 to vector<1x128xi32>
      %125 = arith.cmpi eq, %114, %124 : vector<1x128xi32>
      %126 = vector.broadcast %76 : f32 to vector<1x1xf32>
      %cst_50 = arith.constant 0.000000e+00 : f32
      %127 = vector.shape_cast %126 : vector<1x1xf32> to vector<1x1xf32>
      %128 = vector.broadcast %127 : vector<1x1xf32> to vector<1x128xf32>
      %129 = vector.broadcast %cst_50 : f32 to vector<1x128xf32>
      %130 = arith.select %125, %128, %129 : vector<1x128xi1>, vector<1x128xf32>
      %131 = arith.addf %123, %130 : vector<1x128xf32>
      %c2_i32 = arith.constant 2 : i32
      %132 = vector.broadcast %c2_i32 : i32 to vector<1x128xi32>
      %133 = arith.cmpi eq, %114, %132 : vector<1x128xi32>
      %134 = vector.broadcast %104 : f32 to vector<1x1xf32>
      %cst_51 = arith.constant 0.000000e+00 : f32
      %135 = vector.shape_cast %134 : vector<1x1xf32> to vector<1x1xf32>
      %136 = vector.broadcast %135 : vector<1x1xf32> to vector<1x128xf32>
      %137 = vector.broadcast %cst_51 : f32 to vector<1x128xf32>
      %138 = arith.select %133, %136, %137 : vector<1x128xi1>, vector<1x128xf32>
      %139 = arith.addf %131, %138 : vector<1x128xf32>
      %c3_i32 = arith.constant 3 : i32
      %140 = vector.broadcast %c3_i32 : i32 to vector<1x128xi32>
      %141 = arith.cmpi eq, %114, %140 : vector<1x128xi32>
      %142 = vector.broadcast %113 : f32 to vector<1x1xf32>
      %cst_52 = arith.constant 0.000000e+00 : f32
      %143 = vector.shape_cast %142 : vector<1x1xf32> to vector<1x1xf32>
      %144 = vector.broadcast %143 : vector<1x1xf32> to vector<1x128xf32>
      %145 = vector.broadcast %cst_52 : f32 to vector<1x128xf32>
      %146 = arith.select %141, %144, %145 : vector<1x128xi1>, vector<1x128xf32>
      %147 = arith.addf %139, %146 : vector<1x128xf32>
      %c0_53 = arith.constant 0 : index
      %c0_54 = arith.constant 0 : index
      %c0_55 = arith.constant 0 : index
      %c0_56 = arith.constant 0 : index
      %c0_57 = arith.constant 0 : index
      %148 = vector.load %arg8[%c0_53, %c0_54, %c0_55, %c0_56, %c0_57] : memref<1x1x1x1x128xf32, #tpu.memory_space<vmem>>, vector<1x1x1x1x128xf32>
      %149 = vector.shape_cast %148 : vector<1x1x1x1x128xf32> to vector<1x128xf32>
      %150 = vector.shape_cast %147 : vector<1x128xf32> to vector<1x1x1x1x128xf32>
      tpu.vector_store %arg8[%c0_53, %c0_54, %c0_55, %c0_56, %c0_57], %150 {strides = array<i32>} : memref<1x1x1x1x128xf32, #tpu.memory_space<vmem>>, vector<1x1x1x1x128xf32>,
    } else {
    }
    return
  }
  func.func @transform_0(%arg0: i32, %arg1: i32, %arg2: i32, %arg3: i32) -> (i32, i32, i32, i32) {
    %c0_i32 = arith.constant 0 : i32
    %c0_i32_0 = arith.constant 0 : i32
    return %arg0, %arg1, %arg3, %c0_i32 : i32, i32, i32, i32
  }
  func.func @transform_1(%arg0: i32, %arg1: i32, %arg2: i32, %arg3: i32) -> (i32, i32, i32, i32) {
    %c0_i32 = arith.constant 0 : i32
    %c0_i32_0 = arith.constant 0 : i32
    return %arg0, %arg1, %c0_i32, %arg3 : i32, i32, i32, i32
  }
  func.func @transform_2(%arg0: i32, %arg1: i32, %arg2: i32, %arg3: i32) -> (i32, i32, i32, i32) {
    %c0_i32 = arith.constant 0 : i32
    %c0_i32_0 = arith.constant 0 : i32
    return %arg0, %arg1, %arg3, %c0_i32 : i32, i32, i32, i32
  }
  func.func @transform_3(%arg0: i32, %arg1: i32, %arg2: i32, %arg3: i32) -> (i32, i32, i32, i32) {
    %c0_i32 = arith.constant 0 : i32
    %c0_i32_0 = arith.constant 0 : i32
    return %arg0, %arg1, %c0_i32, %arg3 : i32, i32, i32, i32
  }
  func.func @transform_4(%arg0: i32, %arg1: i32, %arg2: i32, %arg3: i32) -> (i32, i32, i32, i32, i32) {
    %c0_i32 = arith.constant 0 : i32
    %c0_i32_0 = arith.constant 0 : i32
    %c0_i32_1 = arith.constant 0 : i32
    return %arg0, %arg1, %arg2, %c0_i32, %c0_i32_0 : i32, i32, i32, i32, i32
  }
}

module attributes {stable_mosaic.version = 11 : i64} {
  func.func @_deblur_partials_kernel(%arg0: i32, %arg1: i32, %arg2: i32, %arg3: i32, %arg4: memref<1x1x128x1xi32, #tpu.memory_space<vmem>>, %arg5: memref<1x1x4x128xbf16, #tpu.memory_space<vmem>>, %arg6: memref<1x1x128x1xi32, #tpu.memory_space<vmem>>, %arg7: memref<1x1x4x128xbf16, #tpu.memory_space<vmem>>, %arg8: memref<1x1x1x1x128xf32, #tpu.memory_space<vmem>>, %arg9: memref<4x256xf32, #tpu.memory_space<vmem>>, %arg10: memref<4x256xf32, #tpu.memory_space<vmem>>) attributes {dimension_semantics = [#tpu.dimension_semantics<parallel>, #tpu.dimension_semantics<parallel>, #tpu.dimension_semantics<parallel>, #tpu.dimension_semantics<arbitrary>], iteration_bounds = array<i64: 2, 2, 1, 1>, scalar_prefetch = 0 : i64, scratch_operands = 2 : i64, tpu.core_type = #tpu.core_type<tc>, window_params = [{transform_indices = @transform_0, window_bounds = array<i64: 1, 1, 128, 1>}, {transform_indices = @transform_1, window_bounds = array<i64: 1, 1, 4, 128>}, {transform_indices = @transform_2, window_bounds = array<i64: 1, 1, 128, 1>}, {transform_indices = @transform_3, window_bounds = array<i64: 1, 1, 4, 128>}, {transform_indices = @transform_4, window_bounds = array<i64: 1, 1, 1, 1, 128>}]} {
    %c0_i32 = arith.constant 0 : i32
    %0 = arith.cmpi eq, %arg3, %c0_i32 : i32
    %1 = arith.extui %0 : i1 to i32
    %c0_i32_0 = arith.constant 0 : i32
    %2 = arith.cmpi ne, %1, %c0_i32_0 : i32
    scf.if %2 {
      %cst_27 = arith.constant 0.000000e+00 : f32
      %40 = vector.broadcast %cst_27 : f32 to vector<4x256xf32>
      %c0_28 = arith.constant 0 : index
      %c0_29 = arith.constant 0 : index
      %41 = vector.load %arg9[%c0_28, %c0_29] : memref<4x256xf32, #tpu.memory_space<vmem>>, vector<4x256xf32>
      tpu.vector_store %arg9[%c0_28, %c0_29], %40 {strides = array<i32>} : memref<4x256xf32, #tpu.memory_space<vmem>>, vector<4x256xf32>,
      %cst_30 = arith.constant 0.000000e+00 : f32
      %42 = vector.broadcast %cst_30 : f32 to vector<4x256xf32>
      %c0_31 = arith.constant 0 : index
      %c0_32 = arith.constant 0 : index
      %43 = vector.load %arg10[%c0_31, %c0_32] : memref<4x256xf32, #tpu.memory_space<vmem>>, vector<4x256xf32>
      tpu.vector_store %arg10[%c0_31, %c0_32], %42 {strides = array<i32>} : memref<4x256xf32, #tpu.memory_space<vmem>>, vector<4x256xf32>,
    } else {
    }
    %3 = tpu.iota {dimensions = array<i32: 1>} : vector<1x256xi32>
    %c256_i32 = arith.constant 256 : i32
    %4 = arith.muli %arg2, %c256_i32 : i32
    %c0 = arith.constant 0 : index
    %c0_1 = arith.constant 0 : index
    %c0_2 = arith.constant 0 : index
    %c0_3 = arith.constant 0 : index
    %5 = vector.load %arg4[%c0, %c0_1, %c0_2, %c0_3] : memref<1x1x128x1xi32, #tpu.memory_space<vmem>>, vector<1x1x128x1xi32>
    %6 = vector.shape_cast %5 : vector<1x1x128x1xi32> to vector<128x1xi32>
    %7 = vector.broadcast %4 : i32 to vector<128x1xi32>
    %8 = arith.subi %6, %7 : vector<128x1xi32>
    %9 = vector.broadcast %8 : vector<128x1xi32> to vector<128x256xi32>
    %10 = vector.broadcast %3 : vector<1x256xi32> to vector<128x256xi32>
    %11 = arith.cmpi eq, %9, %10 : vector<128x256xi32>
    %12 = arith.extui %11 : vector<128x256xi1> to vector<128x256xi32>
    %13 = arith.sitofp %12 : vector<128x256xi32> to vector<128x256xf32>
    %14 = arith.truncf %13 : vector<128x256xf32> to vector<128x256xbf16>
    %c0_4 = arith.constant 0 : index
    %c0_5 = arith.constant 0 : index
    %15 = vector.load %arg9[%c0_4, %c0_5] : memref<4x256xf32, #tpu.memory_space<vmem>>, vector<4x256xf32>
    %c0_6 = arith.constant 0 : index
    %c0_7 = arith.constant 0 : index
    %c0_8 = arith.constant 0 : index
    %c0_9 = arith.constant 0 : index
    %16 = vector.load %arg5[%c0_6, %c0_7, %c0_8, %c0_9] : memref<1x1x4x128xbf16, #tpu.memory_space<vmem>>, vector<1x1x4x128xbf16>
    %17 = vector.shape_cast %16 : vector<1x1x4x128xbf16> to vector<4x128xbf16>
    %cst = arith.constant dense<0.000000e+00> : vector<4x256xf32>
    %18 = tpu.matmul %17, %14, %cst {dimension_numbers = #tpu.dot_dimension_numbers<[1], [0], [0], [1], [0, 0, 1, 1], [], []>} : vector<4x128xbf16>, vector<128x256xbf16>, vector<4x256xf32> -> vector<4x256xf32>
    %19 = arith.addf %15, %18 : vector<4x256xf32>
    %c0_10 = arith.constant 0 : index
    %c0_11 = arith.constant 0 : index
    %20 = vector.load %arg9[%c0_10, %c0_11] : memref<4x256xf32, #tpu.memory_space<vmem>>, vector<4x256xf32>
    tpu.vector_store %arg9[%c0_10, %c0_11], %19 {strides = array<i32>} : memref<4x256xf32, #tpu.memory_space<vmem>>, vector<4x256xf32>,
    %c0_12 = arith.constant 0 : index
    %c0_13 = arith.constant 0 : index
    %c0_14 = arith.constant 0 : index
    %c0_15 = arith.constant 0 : index
    %21 = vector.load %arg6[%c0_12, %c0_13, %c0_14, %c0_15] : memref<1x1x128x1xi32, #tpu.memory_space<vmem>>, vector<1x1x128x1xi32>
    %22 = vector.shape_cast %21 : vector<1x1x128x1xi32> to vector<128x1xi32>
    %23 = vector.broadcast %4 : i32 to vector<128x1xi32>
    %24 = arith.subi %22, %23 : vector<128x1xi32>
    %25 = vector.broadcast %24 : vector<128x1xi32> to vector<128x256xi32>
    %26 = vector.broadcast %3 : vector<1x256xi32> to vector<128x256xi32>
    %27 = arith.cmpi eq, %25, %26 : vector<128x256xi32>
    %28 = arith.extui %27 : vector<128x256xi1> to vector<128x256xi32>
    %29 = arith.sitofp %28 : vector<128x256xi32> to vector<128x256xf32>
    %30 = arith.truncf %29 : vector<128x256xf32> to vector<128x256xbf16>
    %c0_16 = arith.constant 0 : index
    %c0_17 = arith.constant 0 : index
    %31 = vector.load %arg10[%c0_16, %c0_17] : memref<4x256xf32, #tpu.memory_space<vmem>>, vector<4x256xf32>
    %c0_18 = arith.constant 0 : index
    %c0_19 = arith.constant 0 : index
    %c0_20 = arith.constant 0 : index
    %c0_21 = arith.constant 0 : index
    %32 = vector.load %arg7[%c0_18, %c0_19, %c0_20, %c0_21] : memref<1x1x4x128xbf16, #tpu.memory_space<vmem>>, vector<1x1x4x128xbf16>
    %33 = vector.shape_cast %32 : vector<1x1x4x128xbf16> to vector<4x128xbf16>
    %cst_22 = arith.constant dense<0.000000e+00> : vector<4x256xf32>
    %34 = tpu.matmul %33, %30, %cst_22 {dimension_numbers = #tpu.dot_dimension_numbers<[1], [0], [0], [1], [0, 0, 1, 1], [], []>} : vector<4x128xbf16>, vector<128x256xbf16>, vector<4x256xf32> -> vector<4x256xf32>
    %35 = arith.addf %31, %34 : vector<4x256xf32>
    %c0_23 = arith.constant 0 : index
    %c0_24 = arith.constant 0 : index
    %36 = vector.load %arg10[%c0_23, %c0_24] : memref<4x256xf32, #tpu.memory_space<vmem>>, vector<4x256xf32>
    tpu.vector_store %arg10[%c0_23, %c0_24], %35 {strides = array<i32>} : memref<4x256xf32, #tpu.memory_space<vmem>>, vector<4x256xf32>,
    %c0_i32_25 = arith.constant 0 : i32
    %37 = arith.cmpi eq, %arg3, %c0_i32_25 : i32
    %38 = arith.extui %37 : i1 to i32
    %c0_i32_26 = arith.constant 0 : i32
    %39 = arith.cmpi ne, %38, %c0_i32_26 : i32
    scf.if %39 {
      %c0_27 = arith.constant 0 : index
      %c0_28 = arith.constant 0 : index
      %40 = vector.load %arg9[%c0_27, %c0_28] : memref<4x256xf32, #tpu.memory_space<vmem>>, vector<4x256xf32>
      %41 = vector.extract_strided_slice %40 {offsets = [0, 0], sizes = [1, 256], strides = [1, 1]} : vector<4x256xf32> to vector<1x256xf32>
      %42 = vector.extract_strided_slice %40 {offsets = [1, 0], sizes = [1, 256], strides = [1, 1]} : vector<4x256xf32> to vector<1x256xf32>
      %cst_29 = arith.constant 9.99999971E-10 : f32
      %43 = vector.broadcast %cst_29 : f32 to vector<1x256xf32>
      %44 = arith.addf %41, %43 : vector<1x256xf32>
      %45 = tpu.reciprocal %44 {approx = true} : vector<1x256xf32> -> vector<1x256xf32>
      %cst_30 = arith.constant 9.99999971E-10 : f32
      %46 = vector.broadcast %cst_30 : f32 to vector<1x256xf32>
      %47 = arith.addf %42, %46 : vector<1x256xf32>
      %48 = tpu.reciprocal %47 {approx = true} : vector<1x256xf32> -> vector<1x256xf32>
      %49 = vector.extract_strided_slice %40 {offsets = [2, 0], sizes = [1, 256], strides = [1, 1]} : vector<4x256xf32> to vector<1x256xf32>
      %50 = arith.mulf %49, %45 : vector<1x256xf32>
      %cst_31 = arith.constant 5.000000e-01 : f32
      %51 = vector.broadcast %cst_31 : f32 to vector<1x256xf32>
      %52 = arith.mulf %50, %51 : vector<1x256xf32>
      %53 = vector.extract_strided_slice %40 {offsets = [3, 0], sizes = [1, 256], strides = [1, 1]} : vector<4x256xf32> to vector<1x256xf32>
      %54 = arith.mulf %53, %48 : vector<1x256xf32>
      %cst_32 = arith.constant 5.000000e-01 : f32
      %55 = vector.broadcast %cst_32 : f32 to vector<1x256xf32>
      %56 = arith.mulf %54, %55 : vector<1x256xf32>
      %57 = arith.mulf %52, %52 : vector<1x256xf32>
      %58 = vector.shape_cast %57 : vector<1x256xf32> to vector<1x1x256xf32>
      %cst_33 = arith.constant dense<0.000000e+00> : vector<1xf32>
      %59 = vector.multi_reduction <add>, %58, %cst_33 [1, 2] : vector<1x1x256xf32> to vector<1xf32>
      %60 = vector.shape_cast %59 : vector<1xf32> to vector<1x1x1xf32>
      %61 = vector.extract %60[0, 0, 0] : f32 from vector<1x1x1xf32>
      %62 = arith.mulf %56, %56 : vector<1x256xf32>
      %63 = vector.shape_cast %62 : vector<1x256xf32> to vector<1x1x256xf32>
      %cst_34 = arith.constant dense<0.000000e+00> : vector<1xf32>
      %64 = vector.multi_reduction <add>, %63, %cst_34 [1, 2] : vector<1x1x256xf32> to vector<1xf32>
      %65 = vector.shape_cast %64 : vector<1xf32> to vector<1x1x1xf32>
      %66 = vector.extract %65[0, 0, 0] : f32 from vector<1x1x1xf32>
      %67 = arith.addf %61, %66 : f32
      %68 = arith.addf %41, %42 : vector<1x256xf32>
      %cst_35 = arith.constant 0.000000e+00 : f32
      %69 = vector.broadcast %cst_35 : f32 to vector<1x256xf32>
      %70 = arith.cmpf one, %68, %69 : vector<1x256xf32>
      %71 = arith.extui %70 : vector<1x256xi1> to vector<1x256xi32>
      %72 = arith.sitofp %71 : vector<1x256xi32> to vector<1x256xf32>
      %73 = vector.shape_cast %72 : vector<1x256xf32> to vector<1x1x256xf32>
      %cst_36 = arith.constant dense<0.000000e+00> : vector<1xf32>
      %74 = vector.multi_reduction <add>, %73, %cst_36 [1, 2] : vector<1x1x256xf32> to vector<1xf32>
      %75 = vector.shape_cast %74 : vector<1xf32> to vector<1x1x1xf32>
      %76 = vector.extract %75[0, 0, 0] : f32 from vector<1x1x1xf32>
      %c0_37 = arith.constant 0 : index
      %c0_38 = arith.constant 0 : index
      %77 = vector.load %arg10[%c0_37, %c0_38] : memref<4x256xf32, #tpu.memory_space<vmem>>, vector<4x256xf32>
      %78 = vector.extract_strided_slice %77 {offsets = [0, 0], sizes = [1, 256], strides = [1, 1]} : vector<4x256xf32> to vector<1x256xf32>
      %79 = vector.extract_strided_slice %77 {offsets = [1, 0], sizes = [1, 256], strides = [1, 1]} : vector<4x256xf32> to vector<1x256xf32>
      %cst_39 = arith.constant 9.99999971E-10 : f32
      %80 = vector.broadcast %cst_39 : f32 to vector<1x256xf32>
      %81 = arith.addf %78, %80 : vector<1x256xf32>
      %82 = tpu.reciprocal %81 {approx = true} : vector<1x256xf32> -> vector<1x256xf32>
      %cst_40 = arith.constant 9.99999971E-10 : f32
      %83 = vector.broadcast %cst_40 : f32 to vector<1x256xf32>
      %84 = arith.addf %79, %83 : vector<1x256xf32>
      %85 = tpu.reciprocal %84 {approx = true} : vector<1x256xf32> -> vector<1x256xf32>
      %86 = vector.extract_strided_slice %77 {offsets = [2, 0], sizes = [1, 256], strides = [1, 1]} : vector<4x256xf32> to vector<1x256xf32>
      %87 = arith.mulf %86, %82 : vector<1x256xf32>
      %cst_41 = arith.constant 5.000000e-01 : f32
      %88 = vector.broadcast %cst_41 : f32 to vector<1x256xf32>
      %89 = arith.mulf %87, %88 : vector<1x256xf32>
      %90 = vector.extract_strided_slice %77 {offsets = [3, 0], sizes = [1, 256], strides = [1, 1]} : vector<4x256xf32> to vector<1x256xf32>
      %91 = arith.mulf %90, %85 : vector<1x256xf32>
      %cst_42 = arith.constant 5.000000e-01 : f32
      %92 = vector.broadcast %cst_42 : f32 to vector<1x256xf32>
      %93 = arith.mulf %91, %92 : vector<1x256xf32>
      %94 = arith.mulf %89, %89 : vector<1x256xf32>
      %95 = vector.shape_cast %94 : vector<1x256xf32> to vector<1x1x256xf32>
      %cst_43 = arith.constant dense<0.000000e+00> : vector<1xf32>
      %96 = vector.multi_reduction <add>, %95, %cst_43 [1, 2] : vector<1x1x256xf32> to vector<1xf32>
      %97 = vector.shape_cast %96 : vector<1xf32> to vector<1x1x1xf32>
      %98 = vector.extract %97[0, 0, 0] : f32 from vector<1x1x1xf32>
      %99 = arith.mulf %93, %93 : vector<1x256xf32>
      %100 = vector.shape_cast %99 : vector<1x256xf32> to vector<1x1x256xf32>
      %cst_44 = arith.constant dense<0.000000e+00> : vector<1xf32>
      %101 = vector.multi_reduction <add>, %100, %cst_44 [1, 2] : vector<1x1x256xf32> to vector<1xf32>
      %102 = vector.shape_cast %101 : vector<1xf32> to vector<1x1x1xf32>
      %103 = vector.extract %102[0, 0, 0] : f32 from vector<1x1x1xf32>
      %104 = arith.addf %98, %103 : f32
      %105 = arith.addf %78, %79 : vector<1x256xf32>
      %cst_45 = arith.constant 0.000000e+00 : f32
      %106 = vector.broadcast %cst_45 : f32 to vector<1x256xf32>
      %107 = arith.cmpf one, %105, %106 : vector<1x256xf32>
      %108 = arith.extui %107 : vector<1x256xi1> to vector<1x256xi32>
      %109 = arith.sitofp %108 : vector<1x256xi32> to vector<1x256xf32>
      %110 = vector.shape_cast %109 : vector<1x256xf32> to vector<1x1x256xf32>
      %cst_46 = arith.constant dense<0.000000e+00> : vector<1xf32>
      %111 = vector.multi_reduction <add>, %110, %cst_46 [1, 2] : vector<1x1x256xf32> to vector<1xf32>
      %112 = vector.shape_cast %111 : vector<1xf32> to vector<1x1x1xf32>
      %113 = vector.extract %112[0, 0, 0] : f32 from vector<1x1x1xf32>
      %114 = tpu.iota {dimensions = array<i32: 1>} : vector<1x128xi32>
      %cst_47 = arith.constant 0.000000e+00 : f32
      %115 = vector.broadcast %cst_47 : f32 to vector<1x128xf32>
      %c0_i32_48 = arith.constant 0 : i32
      %116 = vector.broadcast %c0_i32_48 : i32 to vector<1x128xi32>
      %117 = arith.cmpi eq, %114, %116 : vector<1x128xi32>
      %118 = vector.broadcast %67 : f32 to vector<1x1xf32>
      %cst_49 = arith.constant 0.000000e+00 : f32
      %119 = vector.shape_cast %118 : vector<1x1xf32> to vector<1x1xf32>
      %120 = vector.broadcast %119 : vector<1x1xf32> to vector<1x128xf32>
      %121 = vector.broadcast %cst_49 : f32 to vector<1x128xf32>
      %122 = arith.select %117, %120, %121 : vector<1x128xi1>, vector<1x128xf32>
      %123 = arith.addf %115, %122 : vector<1x128xf32>
      %c1_i32 = arith.constant 1 : i32
      %124 = vector.broadcast %c1_i32 : i32 to vector<1x128xi32>
      %125 = arith.cmpi eq, %114, %124 : vector<1x128xi32>
      %126 = vector.broadcast %76 : f32 to vector<1x1xf32>
      %cst_50 = arith.constant 0.000000e+00 : f32
      %127 = vector.shape_cast %126 : vector<1x1xf32> to vector<1x1xf32>
      %128 = vector.broadcast %127 : vector<1x1xf32> to vector<1x128xf32>
      %129 = vector.broadcast %cst_50 : f32 to vector<1x128xf32>
      %130 = arith.select %125, %128, %129 : vector<1x128xi1>, vector<1x128xf32>
      %131 = arith.addf %123, %130 : vector<1x128xf32>
      %c2_i32 = arith.constant 2 : i32
      %132 = vector.broadcast %c2_i32 : i32 to vector<1x128xi32>
      %133 = arith.cmpi eq, %114, %132 : vector<1x128xi32>
      %134 = vector.broadcast %104 : f32 to vector<1x1xf32>
      %cst_51 = arith.constant 0.000000e+00 : f32
      %135 = vector.shape_cast %134 : vector<1x1xf32> to vector<1x1xf32>
      %136 = vector.broadcast %135 : vector<1x1xf32> to vector<1x128xf32>
      %137 = vector.broadcast %cst_51 : f32 to vector<1x128xf32>
      %138 = arith.select %133, %136, %137 : vector<1x128xi1>, vector<1x128xf32>
      %139 = arith.addf %131, %138 : vector<1x128xf32>
      %c3_i32 = arith.constant 3 : i32
      %140 = vector.broadcast %c3_i32 : i32 to vector<1x128xi32>
      %141 = arith.cmpi eq, %114, %140 : vector<1x128xi32>
      %142 = vector.broadcast %113 : f32 to vector<1x1xf32>
      %cst_52 = arith.constant 0.000000e+00 : f32
      %143 = vector.shape_cast %142 : vector<1x1xf32> to vector<1x1xf32>
      %144 = vector.broadcast %143 : vector<1x1xf32> to vector<1x128xf32>
      %145 = vector.broadcast %cst_52 : f32 to vector<1x128xf32>
      %146 = arith.select %141, %144, %145 : vector<1x128xi1>, vector<1x128xf32>
      %147 = arith.addf %139, %146 : vector<1x128xf32>
      %c0_53 = arith.constant 0 : index
      %c0_54 = arith.constant 0 : index
      %c0_55 = arith.constant 0 : index
      %c0_56 = arith.constant 0 : index
      %c0_57 = arith.constant 0 : index
      %148 = vector.load %arg8[%c0_53, %c0_54, %c0_55, %c0_56, %c0_57] : memref<1x1x1x1x128xf32, #tpu.memory_space<vmem>>, vector<1x1x1x1x128xf32>
      %149 = vector.shape_cast %148 : vector<1x1x1x1x128xf32> to vector<1x128xf32>
      %150 = vector.shape_cast %147 : vector<1x128xf32> to vector<1x1x1x1x128xf32>
      tpu.vector_store %arg8[%c0_53, %c0_54, %c0_55, %c0_56, %c0_57], %150 {strides = array<i32>} : memref<1x1x1x1x128xf32, #tpu.memory_space<vmem>>, vector<1x1x1x1x128xf32>,
    } else {
    }
    return
  }
  func.func @transform_0(%arg0: i32, %arg1: i32, %arg2: i32, %arg3: i32) -> (i32, i32, i32, i32) {
    %c0_i32 = arith.constant 0 : i32
    %c0_i32_0 = arith.constant 0 : i32
    return %arg0, %arg1, %arg3, %c0_i32 : i32, i32, i32, i32
  }
  func.func @transform_1(%arg0: i32, %arg1: i32, %arg2: i32, %arg3: i32) -> (i32, i32, i32, i32) {
    %c0_i32 = arith.constant 0 : i32
    %c0_i32_0 = arith.constant 0 : i32
    return %arg0, %arg1, %c0_i32, %arg3 : i32, i32, i32, i32
  }
  func.func @transform_2(%arg0: i32, %arg1: i32, %arg2: i32, %arg3: i32) -> (i32, i32, i32, i32) {
    %c0_i32 = arith.constant 0 : i32
    %c0_i32_0 = arith.constant 0 : i32
    return %arg0, %arg1, %arg3, %c0_i32 : i32, i32, i32, i32
  }
  func.func @transform_3(%arg0: i32, %arg1: i32, %arg2: i32, %arg3: i32) -> (i32, i32, i32, i32) {
    %c0_i32 = arith.constant 0 : i32
    %c0_i32_0 = arith.constant 0 : i32
    return %arg0, %arg1, %c0_i32, %arg3 : i32, i32, i32, i32
  }
  func.func @transform_4(%arg0: i32, %arg1: i32, %arg2: i32, %arg3: i32) -> (i32, i32, i32, i32, i32) {
    %c0_i32 = arith.constant 0 : i32
    %c0_i32_0 = arith.constant 0 : i32
    %c0_i32_1 = arith.constant 0 : i32
    return %arg0, %arg1, %arg2, %c0_i32, %c0_i32_0 : i32, i32, i32, i32, i32
  }
}

</mosaic_0001>

<llo_original>
// kernel: tpu_custom_call.1
$region0: #{tpu_custom_call.1}
  #allocation0 [shape = 'u32[]', space=smem, size = 0x4, offset = 0x4, fixed_abs, tag = 'smem constant byte address 0x4 - core index']
  #allocation1 [shape = 'u32[72,128]{1,0:T(1,128)}', space=vmem, size = 0x9000, scoped, tag = 'internal scratch']
  #allocation2 [shape = 'f32[4,256]{1,0:T(4,128)}', space=vmem, size = 0x1000, scoped, tag = 'scratch operand']
  #allocation3 [shape = 'f32[4,256]{1,0:T(4,128)}', space=vmem, size = 0x1000, scoped, tag = 'scratch operand']
  %s0 = inlined_call_operand.vmem [shape: s32[2,2,128,1], index: 0, kind: input, shape index: {}]
  %s1 = inlined_call_operand.vmem [shape: bf16[2,2,4,128], index: 1, kind: input, shape index: {}]
  %s2 = inlined_call_operand.vmem [shape: s32[2,2,128,1], index: 2, kind: input, shape index: {}]
  %s3 = inlined_call_operand.vmem [shape: bf16[2,2,4,128], index: 3, kind: input, shape index: {}]
  %s4 = inlined_call_operand.hbm [shape: f32[2,2,1,1,128], index: 4, kind: output, shape index: {}]
  %s5 = sld [smem:[#allocation0]]
  $region57: #{tpu_custom_call.1} parent=0
    _
  %s7 = ssub.s32 1, %s5
  %s8 = scalar_select 0, %s7, %s5
  $region1: #{tpu_custom_call.1} parent=0
    #allocation4 [shape = 'u8[1024]{0}', space=vmem, size = 0x400, scoped, tag = 'output window, operand 0']
    #allocation5 [shape = 's32[2]{0}', space=sflag, size = 0x8, scoped, tag = 'scoped memory for tpu_custom_call.1']
    %9 = vsyncpa [#allocation5], 0
    %s10 = scalar_lea.sflag [#allocation5], 1
    %11 = vsyncpa %s10, 0
    loop: start=0, step=1, limit=6
    $region2: #{tpu_custom_call.1} parent=1 // loop_pre_header
      _
    $region3: #{tpu_custom_call.1} parent=1 // loop_header
      %s13 = sphi 0, %s17
      %p14 = scmp.ge.s32.totalorder %s13, 6
      %s20 = sphi 0, %s46
      %s21 = sphi 0, %s42
      %s22 = sphi 0, %s38
      %s23 = sphi 0, %s34
      %s24 = sphi 0, %s20
      %s25 = sphi 0, %s21
      %s26 = sphi 0, %s22
      %s27 = sphi 0, %s23
      %s28 = sphi 0, %s24
      %s29 = sphi 0, %s25
      %s30 = sphi 0, %s26
      %s31 = sphi 0, %s27
      %s53 = sphi 0, %s55
      %s56 = sphi 0, %s53
      %s57 = sphi 0, %s56
      %s73 = sphi 0, %s57
      %s83 = sphi 0, %s85
      %s86 = sphi 0, %s83
      %s87 = sphi 0, %s86
      %s103 = sphi 0, %s87
      %s113 = sphi 0, %s115
      %s116 = sphi 0, %s113
      %s117 = sphi 0, %s116
      %s133 = sphi 0, %s117
      %s143 = sphi 0, %s145
      %s146 = sphi 0, %s143
      %s147 = sphi 0, %s146
      %s163 = sphi 0, %s147
      %s173 = sphi 0, %s175
      %s176 = sphi 0, %s173
      %s177 = sphi 0, %s176
      %s193 = sphi 0, %s177
    $region4: #{tpu_custom_call.1} parent=1 // loop_header_branch
      %16 = sbr.rel (%p14) target = $region8
    $region5: #{tpu_custom_call.1} parent=1 // loop_body
      %s18 = ssub.s32 %s13, 1
      %s19 = ssub.s32 %s13, 2
      %s32 = sadd.s32 1, %s23
      %p33 = scmp.ge.s32.totalorder %s32, 1
      %s34 = scalar_select %p33, 0, %s32
      %s35 = sadd.s32 1, %s22
      %s36 = scalar_select %p33, %s35, %s22
      %p37 = scmp.ge.s32.totalorder %s36, 1
      %s38 = scalar_select %p37, 0, %s36
      %s39 = sadd.s32 1, %s21
      %s40 = scalar_select %p37, %s39, %s21
      %p41 = scmp.ge.s32.totalorder %s40, 2
      %s42 = scalar_select %p41, 0, %s40
      %s43 = sadd.s32 1, %s20
      %s44 = scalar_select %p41, %s43, %s20
      %p45 = scmp.ge.s32.totalorder %s44, 2
      %s46 = scalar_select %p45, 0, %s44
      %s47 = ssub.s32 %s20, %s46
      %s48 = ssub.s32 %s21, %s42
      %s49 = sor.u32 %s47, %s48
      %s50 = ssub.s32 %s23, %s34
      %s51 = sor.u32 %s49, %s50
      %p52 = scmp.eq.s32.totalorder %s51, 0
      %s54 = sadd.s32 %s53, 1
      %s55 = scalar_select %p52, %s53, %s54
      %p58 = pneg %p52
      %p59 = scmp.eq.s32.totalorder %s13, 3
      %p60 = por %p58, %p59
      %p61 = scmp.ne.s32.totalorder %s53, %s56
      %p62 = scmp.eq.s32.totalorder %s13, 0
      %p63 = por %p61, %p62
      %p64 = scmp.ne.s32.totalorder %s53, %s56
      %p65 = scmp.eq.s32.totalorder %s18, 3
      %p66 = por %p64, %p65
      %p67 = scmp.ne.s32.totalorder %s56, %s57
      %p68 = scmp.eq.s32.totalorder %s18, 0
      %p69 = por %p67, %p68
      %p70 = scmp.ne.s32.totalorder %s56, %s57
      %p71 = scmp.eq.s32.totalorder %s19, 3
      %p72 = por %p70, %p71
      %p74 = scmp.ne.s32.totalorder %s57, %s73
      %p75 = scmp.eq.s32.totalorder %s19, 0
      %p76 = por %p74, %p75
      %s77 = ssub.s32 %s20, %s46
      %s78 = ssub.s32 %s21, %s42
      %s79 = sor.u32 %s77, %s78
      %s80 = ssub.s32 %s23, %s34
      %s81 = sor.u32 %s79, %s80
      %p82 = scmp.eq.s32.totalorder %s81, 0
      %s84 = sadd.s32 %s83, 1
      %s85 = scalar_select %p82, %s83, %s84
      %p88 = pneg %p82
      %p89 = scmp.eq.s32.totalorder %s13, 3
      %p90 = por %p88, %p89
      %p91 = scmp.ne.s32.totalorder %s83, %s86
      %p92 = scmp.eq.s32.totalorder %s13, 0
      %p93 = por %p91, %p92
      %p94 = scmp.ne.s32.totalorder %s83, %s86
      %p95 = scmp.eq.s32.totalorder %s18, 3
      %p96 = por %p94, %p95
      %p97 = scmp.ne.s32.totalorder %s86, %s87
      %p98 = scmp.eq.s32.totalorder %s18, 0
      %p99 = por %p97, %p98
      %p100 = scmp.ne.s32.totalorder %s86, %s87
      %p101 = scmp.eq.s32.totalorder %s19, 3
      %p102 = por %p100, %p101
      %p104 = scmp.ne.s32.totalorder %s87, %s103
      %p105 = scmp.eq.s32.totalorder %s19, 0
      %p106 = por %p104, %p105
      %s107 = ssub.s32 %s20, %s46
      %s108 = ssub.s32 %s21, %s42
      %s109 = sor.u32 %s107, %s108
      %s110 = ssub.s32 %s23, %s34
      %s111 = sor.u32 %s109, %s110
      %p112 = scmp.eq.s32.totalorder %s111, 0
      %s114 = sadd.s32 %s113, 1
      %s115 = scalar_select %p112, %s113, %s114
      %p118 = pneg %p112
      %p119 = scmp.eq.s32.totalorder %s13, 3
      %p120 = por %p118, %p119
      %p121 = scmp.ne.s32.totalorder %s113, %s116
      %p122 = scmp.eq.s32.totalorder %s13, 0
      %p123 = por %p121, %p122
      %p124 = scmp.ne.s32.totalorder %s113, %s116
      %p125 = scmp.eq.s32.totalorder %s18, 3
      %p126 = por %p124, %p125
      %p127 = scmp.ne.s32.totalorder %s116, %s117
      %p128 = scmp.eq.s32.totalorder %s18, 0
      %p129 = por %p127, %p128
      %p130 = scmp.ne.s32.totalorder %s116, %s117
      %p131 = scmp.eq.s32.totalorder %s19, 3
      %p132 = por %p130, %p131
      %p134 = scmp.ne.s32.totalorder %s117, %s133
      %p135 = scmp.eq.s32.totalorder %s19, 0
      %p136 = por %p134, %p135
      %s137 = ssub.s32 %s20, %s46
      %s138 = ssub.s32 %s21, %s42
      %s139 = sor.u32 %s137, %s138
      %s140 = ssub.s32 %s23, %s34
      %s141 = sor.u32 %s139, %s140
      %p142 = scmp.eq.s32.totalorder %s141, 0
      %s144 = sadd.s32 %s143, 1
      %s145 = scalar_select %p142, %s143, %s144
      %p148 = pneg %p142
      %p149 = scmp.eq.s32.totalorder %s13, 3
      %p150 = por %p148, %p149
      %p151 = scmp.ne.s32.totalorder %s143, %s146
      %p152 = scmp.eq.s32.totalorder %s13, 0
      %p153 = por %p151, %p152
      %p154 = scmp.ne.s32.totalorder %s143, %s146
      %p155 = scmp.eq.s32.totalorder %s18, 3
      %p156 = por %p154, %p155
      %p157 = scmp.ne.s32.totalorder %s146, %s147
      %p158 = scmp.eq.s32.totalorder %s18, 0
      %p159 = por %p157, %p158
      %p160 = scmp.ne.s32.totalorder %s146, %s147
      %p161 = scmp.eq.s32.totalorder %s19, 3
      %p162 = por %p160, %p161
      %p164 = scmp.ne.s32.totalorder %s147, %s163
      %p165 = scmp.eq.s32.totalorder %s19, 0
      %p166 = por %p164, %p165
      %s167 = ssub.s32 %s20, %s46
      %s168 = ssub.s32 %s21, %s42
      %s169 = sor.u32 %s167, %s168
      %s170 = ssub.s32 %s22, %s38
      %s171 = sor.u32 %s169, %s170
      %p172 = scmp.eq.s32.totalorder %s171, 0
      %s174 = sadd.s32 %s173, 1
      %s175 = scalar_select %p172, %s173, %s174
      %p178 = pneg %p172
      %p179 = scmp.eq.s32.totalorder %s13, 3
      %p180 = por %p178, %p179
      %p181 = scmp.ne.s32.totalorder %s173, %s176
      %p182 = scmp.eq.s32.totalorder %s13, 0
      %p183 = por %p181, %p182
      %p184 = scmp.ne.s32.totalorder %s173, %s176
      %p185 = scmp.eq.s32.totalorder %s18, 3
      %p186 = por %p184, %p185
      %p187 = scmp.ne.s32.totalorder %s176, %s177
      %p188 = scmp.eq.s32.totalorder %s18, 0
      %p189 = por %p187, %p188
      %p190 = scmp.ne.s32.totalorder %s176, %s177
      %p191 = scmp.eq.s32.totalorder %s19, 3
      %p192 = por %p190, %p191
      %p194 = scmp.ne.s32.totalorder %s177, %s193
      %p195 = scmp.eq.s32.totalorder %s19, 0
      %p196 = por %p194, %p195
      %p197 = scmp.le.s32.totalorder 1, %s13
      %p198 = scmp.lt.s32.totalorder %s13, 5
      %p199 = pnand %p197, %p198
      %p200 = pneg %p199
      // Predicated region
      $region9: #{tpu_custom_call.1} parent=5 // pred_check
        _
      $region10: #{tpu_custom_call.1} parent=5 // pred_check_branch
        %202 = sbr.rel (%p199) target = $region12
      $region11: #{tpu_custom_call.1} parent=5 // pred_region
        %s203 = ssub.s32 %s13, 1
      $region12: #{tpu_custom_call.1} parent=5 // pred_fallthru
        _
      %p204 = scmp.lt.s32.totalorder %s13, 4
      // Predicated region
      $region13: #{tpu_custom_call.1} parent=5 // pred_check
        %p205 = pneg %p204
      $region14: #{tpu_custom_call.1} parent=5 // pred_check_branch
        %207 = sbr.rel (%p205) target = $region16
      $region15: #{tpu_custom_call.1} parent=5 // pred_region
        // Predicated region
        $region17: #{tpu_custom_call.1} parent=15 // pred_check
          %p208 = pneg %p63
        $region18: #{tpu_custom_call.1} parent=15 // pred_check_branch
          %210 = sbr.rel (%p208) target = $region20
        $region19: #{tpu_custom_call.1} parent=15 // pred_region
          %s211 = smul.u32 16, %s23
          %p212 = scmp.lt.s32.totalorder %s20, 1
          %s213 = scalar_select %p212, %s20, 1
          %p214 = scmp.lt.s32.totalorder %s21, 1
          %s215 = scalar_select %p214, %s21, 1
          %p216 = scmp.lt.s32.totalorder %s211, 15
          %s217 = scalar_select %p216, %s211, 15
          %s218 = smul.addr %s215, 16
          %s219 = sadd.s32 %s217, %s218
          %s220 = smul.addr %s213, 32
          %s221 = sadd.s32 %s219, %s220
          %s222 = smul.addr %s221, 8
          %s223 = scalar_lea.vmem %s0, %s222
          %s224 = smul.u32 16, %s23
        $region20: #{tpu_custom_call.1} parent=15 // pred_fallthru
          _
        // Predicated region
        $region21: #{tpu_custom_call.1} parent=15 // pred_check
          %p225 = pneg %p93
        $region22: #{tpu_custom_call.1} parent=15 // pred_check_branch
          %227 = sbr.rel (%p225) target = $region24
        $region23: #{tpu_custom_call.1} parent=15 // pred_region
          %p228 = scmp.lt.s32.totalorder %s20, 1
          %s229 = scalar_select %p228, %s20, 1
          %p230 = scmp.lt.s32.totalorder %s21, 1
          %s231 = scalar_select %p230, %s21, 1
          %p232 = scmp.lt.s32.totalorder %s23, 0
          %s233 = scalar_select %p232, %s23, 0
          %s234 = sadd.s32 %s233, %s231
          %s235 = smul.addr %s229, 2
          %s236 = sadd.s32 %s234, %s235
          %s237 = smul.addr %s236, 2
          %s238 = scalar_lea.vmem %s1, %s237
        $region24: #{tpu_custom_call.1} parent=15 // pred_fallthru
          _
        // Predicated region
        $region25: #{tpu_custom_call.1} parent=15 // pred_check
          %p239 = pneg %p123
        $region26: #{tpu_custom_call.1} parent=15 // pred_check_branch
          %241 = sbr.rel (%p239) target = $region28
        $region27: #{tpu_custom_call.1} parent=15 // pred_region
          %s242 = smul.u32 16, %s23
          %p243 = scmp.lt.s32.totalorder %s20, 1
          %s244 = scalar_select %p243, %s20, 1
          %p245 = scmp.lt.s32.totalorder %s21, 1
          %s246 = scalar_select %p245, %s21, 1
          %p247 = scmp.lt.s32.totalorder %s242, 15
          %s248 = scalar_select %p247, %s242, 15
          %s249 = smul.addr %s246, 16
          %s250 = sadd.s32 %s248, %s249
          %s251 = smul.addr %s244, 32
          %s252 = sadd.s32 %s250, %s251
          %s253 = smul.addr %s252, 8
          %s254 = scalar_lea.vmem %s2, %s253
          %s255 = smul.u32 16, %s23
        $region28: #{tpu_custom_call.1} parent=15 // pred_fallthru
          _
        // Predicated region
        $region29: #{tpu_custom_call.1} parent=15 // pred_check
          %p256 = pneg %p153
        $region30: #{tpu_custom_call.1} parent=15 // pred_check_branch
          %258 = sbr.rel (%p256) target = $region32
        $region31: #{tpu_custom_call.1} parent=15 // pred_region
          %p259 = scmp.lt.s32.totalorder %s20, 1
          %s260 = scalar_select %p259, %s20, 1
          %p261 = scmp.lt.s32.totalorder %s21, 1
          %s262 = scalar_select %p261, %s21, 1
          %p263 = scmp.lt.s32.totalorder %s23, 0
          %s264 = scalar_select %p263, %s23, 0
          %s265 = sadd.s32 %s264, %s262
          %s266 = smul.addr %s260, 2
          %s267 = sadd.s32 %s265, %s266
          %s268 = smul.addr %s267, 2
          %s269 = scalar_lea.vmem %s3, %s268
        $region32: #{tpu_custom_call.1} parent=15 // pred_fallthru
          _
      $region16: #{tpu_custom_call.1} parent=5 // pred_fallthru
        _
      %p270 = scmp.le.s32.totalorder 1, %s13
      %p271 = scmp.lt.s32.totalorder %s13, 5
      %p272 = pnand %p270, %p271
      %p273 = pneg %p272
      // Predicated region
      $region33: #{tpu_custom_call.1} parent=5 // pred_check
        _
      $region34: #{tpu_custom_call.1} parent=5 // pred_check_branch
        %275 = sbr.rel (%p272) target = $region36
      $region35: #{tpu_custom_call.1} parent=5 // pred_region
        %s276 = ssub.s32 %s13, 1
        %s277 = smul.u32 16, %s27
        %p278 = scmp.lt.s32.totalorder %s24, 1
        %s279 = scalar_select %p278, %s24, 1
        %p280 = scmp.lt.s32.totalorder %s25, 1
        %s281 = scalar_select %p280, %s25, 1
        %p282 = scmp.lt.s32.totalorder %s277, 15
        %s283 = scalar_select %p282, %s277, 15
        %s284 = smul.addr %s281, 16
        %s285 = sadd.s32 %s283, %s284
        %s286 = smul.addr %s279, 32
        %s287 = sadd.s32 %s285, %s286
        %s288 = smul.addr %s287, 8
        %s289 = scalar_lea.vmem %s0, %s288
        %p290 = pneg %p69
        %p291 = pneg %p66
        %p292 = scmp.lt.s32.totalorder %s24, 1
        %s293 = scalar_select %p292, %s24, 1
        %p294 = scmp.lt.s32.totalorder %s25, 1
        %s295 = scalar_select %p294, %s25, 1
        %p296 = scmp.lt.s32.totalorder %s27, 0
        %s297 = scalar_select %p296, %s27, 0
        %s298 = sadd.s32 %s297, %s295
        %s299 = smul.addr %s293, 2
        %s300 = sadd.s32 %s298, %s299
        %s301 = smul.addr %s300, 2
        %s302 = scalar_lea.vmem %s1, %s301
        %p303 = pneg %p99
        %p304 = pneg %p96
        %s305 = smul.u32 16, %s27
        %p306 = scmp.lt.s32.totalorder %s24, 1
        %s307 = scalar_select %p306, %s24, 1
        %p308 = scmp.lt.s32.totalorder %s25, 1
        %s309 = scalar_select %p308, %s25, 1
        %p310 = scmp.lt.s32.totalorder %s305, 15
        %s311 = scalar_select %p310, %s305, 15
        %s312 = smul.addr %s309, 16
        %s313 = sadd.s32 %s311, %s312
        %s314 = smul.addr %s307, 32
        %s315 = sadd.s32 %s313, %s314
        %s316 = smul.addr %s315, 8
        %s317 = scalar_lea.vmem %s2, %s316
        %p318 = pneg %p129
        %p319 = pneg %p126
        %p320 = scmp.lt.s32.totalorder %s24, 1
        %s321 = scalar_select %p320, %s24, 1
        %p322 = scmp.lt.s32.totalorder %s25, 1
        %s323 = scalar_select %p322, %s25, 1
        %p324 = scmp.lt.s32.totalorder %s27, 0
        %s325 = scalar_select %p324, %s27, 0
        %s326 = sadd.s32 %s325, %s323
        %s327 = smul.addr %s321, 2
        %s328 = sadd.s32 %s326, %s327
        %s329 = smul.addr %s328, 2
        %s330 = scalar_lea.vmem %s3, %s329
        %p331 = pneg %p159
        %p332 = pneg %p156
        %p333 = pneg %p189
        %p334 = pneg %p186
        %s335 = sand.u32 %s176, 1
        %s336 = scalar_lea.sflag [#allocation5], %s335
        %s337 = sand.u32 %s176, 1
        %s338 = scalar_lea.vmem [#allocation4], %s337
        %s339 = smul.u32 16, %s27
        %p340 = scmp.lt.s32.totalorder %s24, 1
        %s341 = scalar_select %p340, %s24, 1
        %p342 = scmp.lt.s32.totalorder %s25, 1
        %s343 = scalar_select %p342, %s25, 1
        %p344 = scmp.lt.s32.totalorder %s339, 15
        %s345 = scalar_select %p344, %s339, 15
        %s346 = smul.addr %s343, 16
        %s347 = sadd.s32 %s345, %s346
        %s348 = smul.addr %s341, 32
        %s349 = sadd.s32 %s347, %s348
        %s350 = smul.addr %s349, 8
        %s351 = scalar_lea.vmem %s0, %s350
        %s352 = smul.u32 16, %s27
        %p353 = scmp.lt.s32.totalorder %s24, 1
        %s354 = scalar_select %p353, %s24, 1
        %p355 = scmp.lt.s32.totalorder %s25, 1
        %s356 = scalar_select %p355, %s25, 1
        %p357 = scmp.lt.s32.totalorder %s27, 0
        %s358 = scalar_select %p357, %s27, 0
        %s359 = sadd.s32 %s358, %s356
        %s360 = smul.addr %s354, 2
        %s361 = sadd.s32 %s359, %s360
        %s362 = smul.addr %s361, 2
        %s363 = scalar_lea.vmem %s1, %s362
        %s364 = smul.u32 16, %s27
        %p365 = scmp.lt.s32.totalorder %s24, 1
        %s366 = scalar_select %p365, %s24, 1
        %p367 = scmp.lt.s32.totalorder %s25, 1
        %s368 = scalar_select %p367, %s25, 1
        %p369 = scmp.lt.s32.totalorder %s364, 15
        %s370 = scalar_select %p369, %s364, 15
        %s371 = smul.addr %s368, 16
        %s372 = sadd.s32 %s370, %s371
        %s373 = smul.addr %s366, 32
        %s374 = sadd.s32 %s372, %s373
        %s375 = smul.addr %s374, 8
        %s376 = scalar_lea.vmem %s2, %s375
        %s377 = smul.u32 16, %s27
        %p378 = scmp.lt.s32.totalorder %s24, 1
        %s379 = scalar_select %p378, %s24, 1
        %p380 = scmp.lt.s32.totalorder %s25, 1
        %s381 = scalar_select %p380, %s25, 1
        %p382 = scmp.lt.s32.totalorder %s27, 0
        %s383 = scalar_select %p382, %s27, 0
        %s384 = sadd.s32 %s383, %s381
        %s385 = smul.addr %s379, 2
        %s386 = sadd.s32 %s384, %s385
        %s387 = smul.addr %s386, 2
        %s388 = scalar_lea.vmem %s3, %s387
        %p389 = scmp.eq.s32.totalorder %s27, 0
        // Predicated region
        $region37: #{tpu_custom_call.1} parent=35 // pred_check
          %p390 = pneg %p389
        $region38: #{tpu_custom_call.1} parent=35 // pred_check_branch
          %392 = sbr.rel (%p390) target = $region40
        $region39: #{tpu_custom_call.1} parent=35 // pred_region
          %393 = vst [vmem:[#allocation2] sm:$0xff] 0.0
          %394 = vst [vmem:[#allocation3] sm:$0xff] 0.0
        $region40: #{tpu_custom_call.1} parent=35 // pred_fallthru
          _
        %v395 = vlaneseq
        %v396 = vand.u32 %v395, 127
        %v397 = vadd.s32 %v396, 128
        %s398 = smul.u32 %s26, 256
        %v399 = vld [vmem:[%s351] sm:$0xff]
        %v400 = vld [vmem:[%s351 + $0x8] sm:$0xff]
        %v401 = vld [vmem:[%s351 + $0x10] sm:$0xff]
        %v402 = vld [vmem:[%s351 + $0x18] sm:$0xff]
        %v403 = vld [vmem:[%s351 + $0x20] sm:$0xff]
        %v404 = vld [vmem:[%s351 + $0x28] sm:$0xff]
        %v405 = vld [vmem:[%s351 + $0x30] sm:$0xff]
        %v406 = vld [vmem:[%s351 + $0x38] sm:$0xff]
        %v407 = vld [vmem:[%s351 + $0x40] sm:$0xff]
        %v408 = vld [vmem:[%s351 + $0x48] sm:$0xff]
        %v409 = vld [vmem:[%s351 + $0x50] sm:$0xff]
        %v410 = vld [vmem:[%s351 + $0x58] sm:$0xff]
        %v411 = vld [vmem:[%s351 + $0x60] sm:$0xff]
        %v412 = vld [vmem:[%s351 + $0x68] sm:$0xff]
        %v413 = vld [vmem:[%s351 + $0x70] sm:$0xff]
        %v414 = vld [vmem:[%s351 + $0x78] sm:$0xff]
        %v415 = vstv %s398
        %v416 = vsub.s32 %v399, %v415
        %v417 = vsub.s32 %v400, %v415
        %v418 = vsub.s32 %v401, %v415
        %v419 = vsub.s32 %v402, %v415
        %v420 = vsub.s32 %v403, %v415
        %v421 = vsub.s32 %v404, %v415
        %v422 = vsub.s32 %v405, %v415
        %v423 = vsub.s32 %v406, %v415
        %v424 = vsub.s32 %v407, %v415
        %v425 = vsub.s32 %v408, %v415
        %v426 = vsub.s32 %v409, %v415
        %v427 = vsub.s32 %v410, %v415
        %v428 = vsub.s32 %v411, %v415
        %v429 = vsub.s32 %v412, %v415
        %v430 = vsub.s32 %v413, %v415
        %v431 = vsub.s32 %v414, %v415
        %432 = vset.pattern.permute.xlu0 0
        %433 = vperm.xlu0 %432, %v416
        %v434 = vpop.permute.xlu0 %433
        %435 = vset.pattern.permute.xlu0 0
        %436 = vperm.xlu0 %435, %v417
        %v437 = vpop.permute.xlu0 %436
        %438 = vset.pattern.permute.xlu0 0
        %439 = vperm.xlu0 %438, %v418
        %v440 = vpop.permute.xlu0 %439
        %441 = vset.pattern.permute.xlu0 0
        %442 = vperm.xlu0 %441, %v419
        %v443 = vpop.permute.xlu0 %442
        %444 = vset.pattern.permute.xlu0 0
        %445 = vperm.xlu0 %444, %v420
        %v446 = vpop.permute.xlu0 %445
        %447 = vset.pattern.permute.xlu0 0
        %448 = vperm.xlu0 %447, %v421
        %v449 = vpop.permute.xlu0 %448
        %450 = vset.pattern.permute.xlu0 0
        %451 = vperm.xlu0 %450, %v422
        %v452 = vpop.permute.xlu0 %451
        %453 = vset.pattern.permute.xlu0 0
        %454 = vperm.xlu0 %453, %v423
        %v455 = vpop.permute.xlu0 %454
        %456 = vset.pattern.permute.xlu0 0
        %457 = vperm.xlu0 %456, %v424
        %v458 = vpop.permute.xlu0 %457
        %459 = vset.pattern.permute.xlu0 0
        %460 = vperm.xlu0 %459, %v425
        %v461 = vpop.permute.xlu0 %460
        %462 = vset.pattern.permute.xlu0 0
        %463 = vperm.xlu0 %462, %v426
        %v464 = vpop.permute.xlu0 %463
        %465 = vset.pattern.permute.xlu0 0
        %466 = vperm.xlu0 %465, %v427
        %v467 = vpop.permute.xlu0 %466
        %468 = vset.pattern.permute.xlu0 0
        %469 = vperm.xlu0 %468, %v428
        %v470 = vpop.permute.xlu0 %469
        %471 = vset.pattern.permute.xlu0 0
        %472 = vperm.xlu0 %471, %v429
        %v473 = vpop.permute.xlu0 %472
        %474 = vset.pattern.permute.xlu0 0
        %475 = vperm.xlu0 %474, %v430
        %v476 = vpop.permute.xlu0 %475
        %477 = vset.pattern.permute.xlu0 0
        %478 = vperm.xlu0 %477, %v431
        %v479 = vpop.permute.xlu0 %478
        %vm480 = vcmp.eq.s32.totalorder %v434, %v396
        %vm481 = vcmp.eq.s32.totalorder %v434, %v397
        %vm482 = vcmp.eq.s32.totalorder %v437, %v396
        %vm483 = vcmp.eq.s32.totalorder %v437, %v397
        %vm484 = vcmp.eq.s32.totalorder %v440, %v396
        %vm485 = vcmp.eq.s32.totalorder %v440, %v397
        %vm486 = vcmp.eq.s32.totalorder %v443, %v396
        %vm487 = vcmp.eq.s32.totalorder %v443, %v397
        %vm488 = vcmp.eq.s32.totalorder %v446, %v396
        %vm489 = vcmp.eq.s32.totalorder %v446, %v397
        %vm490 = vcmp.eq.s32.totalorder %v449, %v396
        %vm491 = vcmp.eq.s32.totalorder %v449, %v397
        %vm492 = vcmp.eq.s32.totalorder %v452, %v396
        %vm493 = vcmp.eq.s32.totalorder %v452, %v397
        %vm494 = vcmp.eq.s32.totalorder %v455, %v396
        %vm495 = vcmp.eq.s32.totalorder %v455, %v397
        %vm496 = vcmp.eq.s32.totalorder %v458, %v396
        %vm497 = vcmp.eq.s32.totalorder %v458, %v397
        %vm498 = vcmp.eq.s32.totalorder %v461, %v396
        %vm499 = vcmp.eq.s32.totalorder %v461, %v397
        %vm500 = vcmp.eq.s32.totalorder %v464, %v396
        %vm501 = vcmp.eq.s32.totalorder %v464, %v397
        %vm502 = vcmp.eq.s32.totalorder %v467, %v396
        %vm503 = vcmp.eq.s32.totalorder %v467, %v397
        %vm504 = vcmp.eq.s32.totalorder %v470, %v396
        %vm505 = vcmp.eq.s32.totalorder %v470, %v397
        %vm506 = vcmp.eq.s32.totalorder %v473, %v396
        %vm507 = vcmp.eq.s32.totalorder %v473, %v397
        %vm508 = vcmp.eq.s32.totalorder %v476, %v396
        %vm509 = vcmp.eq.s32.totalorder %v476, %v397
        %vm510 = vcmp.eq.s32.totalorder %v479, %v396
        %vm511 = vcmp.eq.s32.totalorder %v479, %v397
        %v512 = vsel %vm480, 1, 0
        %v513 = vsel %vm481, 1, 0
        %v514 = vsel %vm482, 1, 0
        %v515 = vsel %vm483, 1, 0
        %v516 = vsel %vm484, 1, 0
        %v517 = vsel %vm485, 1, 0
        %v518 = vsel %vm486, 1, 0
        %v519 = vsel %vm487, 1, 0
        %v520 = vsel %vm488, 1, 0
        %v521 = vsel %vm489, 1, 0
        %v522 = vsel %vm490, 1, 0
        %v523 = vsel %vm491, 1, 0
        %v524 = vsel %vm492, 1, 0
        %v525 = vsel %vm493, 1, 0
        %v526 = vsel %vm494, 1, 0
        %v527 = vsel %vm495, 1, 0
        %v528 = vsel %vm496, 1, 0
        %v529 = vsel %vm497, 1, 0
        %v530 = vsel %vm498, 1, 0
        %v531 = vsel %vm499, 1, 0
        %v532 = vsel %vm500, 1, 0
        %v533 = vsel %vm501, 1, 0
        %v534 = vsel %vm502, 1, 0
        %v535 = vsel %vm503, 1, 0
        %v536 = vsel %vm504, 1, 0
        %v537 = vsel %vm505, 1, 0
        %v538 = vsel %vm506, 1, 0
        %v539 = vsel %vm507, 1, 0
        %v540 = vsel %vm508, 1, 0
        %v541 = vsel %vm509, 1, 0
        %v542 = vsel %vm510, 1, 0
        %v543 = vsel %vm511, 1, 0
        %v544 = vcvt.s32.f32 %v512
        %v545 = vcvt.s32.f32 %v513
        %v546 = vcvt.s32.f32 %v514
        %v547 = vcvt.s32.f32 %v515
        %v548 = vcvt.s32.f32 %v516
        %v549 = vcvt.s32.f32 %v517
        %v550 = vcvt.s32.f32 %v518
        %v551 = vcvt.s32.f32 %v519
        %v552 = vcvt.s32.f32 %v520
        %v553 = vcvt.s32.f32 %v521
        %v554 = vcvt.s32.f32 %v522
        %v555 = vcvt.s32.f32 %v523
        %v556 = vcvt.s32.f32 %v524
        %v557 = vcvt.s32.f32 %v525
        %v558 = vcvt.s32.f32 %v526
        %v559 = vcvt.s32.f32 %v527
        %v560 = vcvt.s32.f32 %v528
        %v561 = vcvt.s32.f32 %v529
        %v562 = vcvt.s32.f32 %v530
        %v563 = vcvt.s32.f32 %v531
        %v564 = vcvt.s32.f32 %v532
        %v565 = vcvt.s32.f32 %v533
        %v566 = vcvt.s32.f32 %v534
        %v567 = vcvt.s32.f32 %v535
        %v568 = vcvt.s32.f32 %v536
        %v569 = vcvt.s32.f32 %v537
        %v570 = vcvt.s32.f32 %v538
        %v571 = vcvt.s32.f32 %v539
        %v572 = vcvt.s32.f32 %v540
        %v573 = vcvt.s32.f32 %v541
        %v574 = vcvt.s32.f32 %v542
        %v575 = vcvt.s32.f32 %v543
        %v576 = vpack.c.bf16 %v546, %v544
        %v577 = vpack.c.bf16 %v547, %v545
        %v578 = vpack.c.bf16 %v550, %v548
        %v579 = vpack.c.bf16 %v551, %v549
        %v580 = vpack.c.bf16 %v554, %v552
        %v581 = vpack.c.bf16 %v555, %v553
        %v582 = vpack.c.bf16 %v558, %v556
        %v583 = vpack.c.bf16 %v559, %v557
        %v584 = vpack.c.bf16 %v562, %v560
        %v585 = vpack.c.bf16 %v563, %v561
        %v586 = vpack.c.bf16 %v566, %v564
        %v587 = vpack.c.bf16 %v567, %v565
        %v588 = vpack.c.bf16 %v570, %v568
        %v589 = vpack.c.bf16 %v571, %v569
        %v590 = vpack.c.bf16 %v574, %v572
        %v591 = vpack.c.bf16 %v575, %v573
        %v592 = vld [vmem:[#allocation2] sm:$0xff]
        %v593 = vld [vmem:[%s363] sm:$0x3]
        %594 = vmatpush.bf16.msra.mxu0 %v590
        %595 = vmatpush.bf16.msra.mxu0 %v588
        %596 = vmatpush.bf16.msra.mxu0 %v586
        %597 = vmatpush.bf16.msra.mxu0 %v584
        %598 = vmatpush.bf16.msra.mxu0 %v582
        %599 = vmatpush.bf16.msra.mxu0 %v580
        %600 = vmatpush.bf16.msra.mxu0 %v578
        %601 = vmatpush.bf16.msra.mxu0 %v576
        %602 = vmatmul.bf16.gmra.mxu0 %v593
        %v603 = vpop.f32.mrf.mxu0
        %v604 = vadd.f32 0.0, %v603
        %v605 = vpop.f32.mrf.mxu0
        %606 = vdwg.mxu0
        %607 = vmatpush.bf16.msra.mxu0 %v591
        %608 = vmatpush.bf16.msra.mxu0 %v589
        %609 = vmatpush.bf16.msra.mxu0 %v587
        %610 = vmatpush.bf16.msra.mxu0 %v585
        %611 = vmatpush.bf16.msra.mxu0 %v583
        %612 = vmatpush.bf16.msra.mxu0 %v581
        %613 = vmatpush.bf16.msra.mxu0 %v579
        %614 = vmatpush.bf16.msra.mxu0 %v577
        %615 = vmatmul.bf16.gmra.mxu0 %v593
        %v616 = vpop.f32.mrf.mxu0
        %v617 = vadd.f32 0.0, %v616
        %v618 = vpop.f32.mrf.mxu0
        %619 = vdwg.mxu0
        %v622 = vrot.slane %v617, 4
        %vm623 = vcmask 1043456
        %v624 = vsel %vm623, %v604, %v622
        %v626 = vadd.f32 %v592, %v624
        %627 = vst [vmem:[#allocation2] sm:$0xff] %v626
        %v628 = vld [vmem:[%s376] sm:$0xff]
        %v629 = vld [vmem:[%s376 + $0x8] sm:$0xff]
        %v630 = vld [vmem:[%s376 + $0x10] sm:$0xff]
        %v631 = vld [vmem:[%s376 + $0x18] sm:$0xff]
        %v632 = vld [vmem:[%s376 + $0x20] sm:$0xff]
        %v633 = vld [vmem:[%s376 + $0x28] sm:$0xff]
        %v634 = vld [vmem:[%s376 + $0x30] sm:$0xff]
        %v635 = vld [vmem:[%s376 + $0x38] sm:$0xff]
        %v636 = vld [vmem:[%s376 + $0x40] sm:$0xff]
        %v637 = vld [vmem:[%s376 + $0x48] sm:$0xff]
        %v638 = vld [vmem:[%s376 + $0x50] sm:$0xff]
        %v639 = vld [vmem:[%s376 + $0x58] sm:$0xff]
        %v640 = vld [vmem:[%s376 + $0x60] sm:$0xff]
        %v641 = vld [vmem:[%s376 + $0x68] sm:$0xff]
        %v642 = vld [vmem:[%s376 + $0x70] sm:$0xff]
        %v643 = vld [vmem:[%s376 + $0x78] sm:$0xff]
        %v644 = vsub.s32 %v628, %v415
        %v645 = vsub.s32 %v629, %v415
        %v646 = vsub.s32 %v630, %v415
        %v647 = vsub.s32 %v631, %v415
        %v648 = vsub.s32 %v632, %v415
        %v649 = vsub.s32 %v633, %v415
        %v650 = vsub.s32 %v634, %v415
        %v651 = vsub.s32 %v635, %v415
        %v652 = vsub.s32 %v636, %v415
        %v653 = vsub.s32 %v637, %v415
        %v654 = vsub.s32 %v638, %v415
        %v655 = vsub.s32 %v639, %v415
        %v656 = vsub.s32 %v640, %v415
        %v657 = vsub.s32 %v641, %v415
        %v658 = vsub.s32 %v642, %v415
        %v659 = vsub.s32 %v643, %v415
        %660 = vset.pattern.permute.xlu0 0
        %661 = vperm.xlu0 %660, %v644
        %v662 = vpop.permute.xlu0 %661
        %663 = vset.pattern.permute.xlu0 0
        %664 = vperm.xlu0 %663, %v645
        %v665 = vpop.permute.xlu0 %664
        %666 = vset.pattern.permute.xlu0 0
        %667 = vperm.xlu0 %666, %v646
        %v668 = vpop.permute.xlu0 %667
        %669 = vset.pattern.permute.xlu0 0
        %670 = vperm.xlu0 %669, %v647
        %v671 = vpop.permute.xlu0 %670
        %672 = vset.pattern.permute.xlu0 0
        %673 = vperm.xlu0 %672, %v648
        %v674 = vpop.permute.xlu0 %673
        %675 = vset.pattern.permute.xlu0 0
        %676 = vperm.xlu0 %675, %v649
        %v677 = vpop.permute.xlu0 %676
        %678 = vset.pattern.permute.xlu0 0
        %679 = vperm.xlu0 %678, %v650
        %v680 = vpop.permute.xlu0 %679
        %681 = vset.pattern.permute.xlu0 0
        %682 = vperm.xlu0 %681, %v651
        %v683 = vpop.permute.xlu0 %682
        %684 = vset.pattern.permute.xlu0 0
        %685 = vperm.xlu0 %684, %v652
        %v686 = vpop.permute.xlu0 %685
        %687 = vset.pattern.permute.xlu0 0
        %688 = vperm.xlu0 %687, %v653
        %v689 = vpop.permute.xlu0 %688
        %690 = vset.pattern.permute.xlu0 0
        %691 = vperm.xlu0 %690, %v654
        %v692 = vpop.permute.xlu0 %691
        %693 = vset.pattern.permute.xlu0 0
        %694 = vperm.xlu0 %693, %v655
        %v695 = vpop.permute.xlu0 %694
        %696 = vset.pattern.permute.xlu0 0
        %697 = vperm.xlu0 %696, %v656
        %v698 = vpop.permute.xlu0 %697
        %699 = vset.pattern.permute.xlu0 0
        %700 = vperm.xlu0 %699, %v657
        %v701 = vpop.permute.xlu0 %700
        %702 = vset.pattern.permute.xlu0 0
        %703 = vperm.xlu0 %702, %v658
        %v704 = vpop.permute.xlu0 %703
        %705 = vset.pattern.permute.xlu0 0
        %706 = vperm.xlu0 %705, %v659
        %v707 = vpop.permute.xlu0 %706
        %vm708 = vcmp.eq.s32.totalorder %v662, %v396
        %vm709 = vcmp.eq.s32.totalorder %v662, %v397
        %vm710 = vcmp.eq.s32.totalorder %v665, %v396
        %vm711 = vcmp.eq.s32.totalorder %v665, %v397
        %vm712 = vcmp.eq.s32.totalorder %v668, %v396
        %vm713 = vcmp.eq.s32.totalorder %v668, %v397
        %vm714 = vcmp.eq.s32.totalorder %v671, %v396
        %vm715 = vcmp.eq.s32.totalorder %v671, %v397
        %vm716 = vcmp.eq.s32.totalorder %v674, %v396
        %vm717 = vcmp.eq.s32.totalorder %v674, %v397
        %vm718 = vcmp.eq.s32.totalorder %v677, %v396
        %vm719 = vcmp.eq.s32.totalorder %v677, %v397
        %vm720 = vcmp.eq.s32.totalorder %v680, %v396
        %vm721 = vcmp.eq.s32.totalorder %v680, %v397
        %vm722 = vcmp.eq.s32.totalorder %v683, %v396
        %vm723 = vcmp.eq.s32.totalorder %v683, %v397
        %vm724 = vcmp.eq.s32.totalorder %v686, %v396
        %vm725 = vcmp.eq.s32.totalorder %v686, %v397
        %vm726 = vcmp.eq.s32.totalorder %v689, %v396
        %vm727 = vcmp.eq.s32.totalorder %v689, %v397
        %vm728 = vcmp.eq.s32.totalorder %v692, %v396
        %vm729 = vcmp.eq.s32.totalorder %v692, %v397
        %vm730 = vcmp.eq.s32.totalorder %v695, %v396
        %vm731 = vcmp.eq.s32.totalorder %v695, %v397
        %vm732 = vcmp.eq.s32.totalorder %v698, %v396
        %vm733 = vcmp.eq.s32.totalorder %v698, %v397
        %vm734 = vcmp.eq.s32.totalorder %v701, %v396
        %vm735 = vcmp.eq.s32.totalorder %v701, %v397
        %vm736 = vcmp.eq.s32.totalorder %v704, %v396
        %vm737 = vcmp.eq.s32.totalorder %v704, %v397
        %vm738 = vcmp.eq.s32.totalorder %v707, %v396
        %vm739 = vcmp.eq.s32.totalorder %v707, %v397
        %v740 = vsel %vm708, 1, 0
        %v741 = vsel %vm709, 1, 0
        %v742 = vsel %vm710, 1, 0
        %v743 = vsel %vm711, 1, 0
        %v744 = vsel %vm712, 1, 0
        %v745 = vsel %vm713, 1, 0
        %v746 = vsel %vm714, 1, 0
        %v747 = vsel %vm715, 1, 0
        %v748 = vsel %vm716, 1, 0
        %v749 = vsel %vm717, 1, 0
        %v750 = vsel %vm718, 1, 0
        %v751 = vsel %vm719, 1, 0
        %v752 = vsel %vm720, 1, 0
        %v753 = vsel %vm721, 1, 0
        %v754 = vsel %vm722, 1, 0
        %v755 = vsel %vm723, 1, 0
        %v756 = vsel %vm724, 1, 0
        %v757 = vsel %vm725, 1, 0
        %v758 = vsel %vm726, 1, 0
        %v759 = vsel %vm727, 1, 0
        %v760 = vsel %vm728, 1, 0
        %v761 = vsel %vm729, 1, 0
        %v762 = vsel %vm730, 1, 0
        %v763 = vsel %vm731, 1, 0
        %v764 = vsel %vm732, 1, 0
        %v765 = vsel %vm733, 1, 0
        %v766 = vsel %vm734, 1, 0
        %v767 = vsel %vm735, 1, 0
        %v768 = vsel %vm736, 1, 0
        %v769 = vsel %vm737, 1, 0
        %v770 = vsel %vm738, 1, 0
        %v771 = vsel %vm739, 1, 0
        %v772 = vcvt.s32.f32 %v740
        %v773 = vcvt.s32.f32 %v741
        %v774 = vcvt.s32.f32 %v742
        %v775 = vcvt.s32.f32 %v743
        %v776 = vcvt.s32.f32 %v744
        %v777 = vcvt.s32.f32 %v745
        %v778 = vcvt.s32.f32 %v746
        %v779 = vcvt.s32.f32 %v747
        %v780 = vcvt.s32.f32 %v748
        %v781 = vcvt.s32.f32 %v749
        %v782 = vcvt.s32.f32 %v750
        %v783 = vcvt.s32.f32 %v751
        %v784 = vcvt.s32.f32 %v752
        %v785 = vcvt.s32.f32 %v753
        %v786 = vcvt.s32.f32 %v754
        %v787 = vcvt.s32.f32 %v755
        %v788 = vcvt.s32.f32 %v756
        %v789 = vcvt.s32.f32 %v757
        %v790 = vcvt.s32.f32 %v758
        %v791 = vcvt.s32.f32 %v759
        %v792 = vcvt.s32.f32 %v760
        %v793 = vcvt.s32.f32 %v761
        %v794 = vcvt.s32.f32 %v762
        %v795 = vcvt.s32.f32 %v763
        %v796 = vcvt.s32.f32 %v764
        %v797 = vcvt.s32.f32 %v765
        %v798 = vcvt.s32.f32 %v766
        %v799 = vcvt.s32.f32 %v767
        %v800 = vcvt.s32.f32 %v768
        %v801 = vcvt.s32.f32 %v769
        %v802 = vcvt.s32.f32 %v770
        %v803 = vcvt.s32.f32 %v771
        %v804 = vpack.c.bf16 %v774, %v772
        %v805 = vpack.c.bf16 %v775, %v773
        %v806 = vpack.c.bf16 %v778, %v776
        %v807 = vpack.c.bf16 %v779, %v777
        %v808 = vpack.c.bf16 %v782, %v780
        %v809 = vpack.c.bf16 %v783, %v781
        %v810 = vpack.c.bf16 %v786, %v784
        %v811 = vpack.c.bf16 %v787, %v785
        %v812 = vpack.c.bf16 %v790, %v788
        %v813 = vpack.c.bf16 %v791, %v789
        %v814 = vpack.c.bf16 %v794, %v792
        %v815 = vpack.c.bf16 %v795, %v793
        %v816 = vpack.c.bf16 %v798, %v796
        %v817 = vpack.c.bf16 %v799, %v797
        %v818 = vpack.c.bf16 %v802, %v800
        %v819 = vpack.c.bf16 %v803, %v801
        %v820 = vld [vmem:[#allocation3] sm:$0xff]
        %v821 = vld [vmem:[%s388] sm:$0x3]
        %822 = vmatpush.bf16.msra.mxu0 %v818
        %823 = vmatpush.bf16.msra.mxu0 %v816
        %824 = vmatpush.bf16.msra.mxu0 %v814
        %825 = vmatpush.bf16.msra.mxu0 %v812
        %826 = vmatpush.bf16.msra.mxu0 %v810
        %827 = vmatpush.bf16.msra.mxu0 %v808
        %828 = vmatpush.bf16.msra.mxu0 %v806
        %829 = vmatpush.bf16.msra.mxu0 %v804
        %830 = vmatmul.bf16.gmra.mxu0 %v821
        %v831 = vpop.f32.mrf.mxu0
        %v832 = vadd.f32 0.0, %v831
        %v833 = vpop.f32.mrf.mxu0
        %834 = vdwg.mxu0
        %835 = vmatpush.bf16.msra.mxu0 %v819
        %836 = vmatpush.bf16.msra.mxu0 %v817
        %837 = vmatpush.bf16.msra.mxu0 %v815
        %838 = vmatpush.bf16.msra.mxu0 %v813
        %839 = vmatpush.bf16.msra.mxu0 %v811
        %840 = vmatpush.bf16.msra.mxu0 %v809
        %841 = vmatpush.bf16.msra.mxu0 %v807
        %842 = vmatpush.bf16.msra.mxu0 %v805
        %843 = vmatmul.bf16.gmra.mxu0 %v821
        %v844 = vpop.f32.mrf.mxu0
        %v845 = vadd.f32 0.0, %v844
        %v846 = vpop.f32.mrf.mxu0
        %847 = vdwg.mxu0
        %v850 = vrot.slane %v845, 4
        %v851 = vsel %vm623, %v832, %v850
        %v853 = vadd.f32 %v820, %v851
        %854 = vst [vmem:[#allocation3] sm:$0xff] %v853
        // Predicated region
        $region41: #{tpu_custom_call.1} parent=35 // pred_check
          %p855 = pneg %p389
        $region42: #{tpu_custom_call.1} parent=35 // pred_check_branch
          %857 = sbr.rel (%p855) target = $region44
        $region43: #{tpu_custom_call.1} parent=35 // pred_region
          %v858 = vld [vmem:[#allocation2] sm:$0xff]
          %v859 = vadd.f32 %v858, 1e-09
          %v860 = vrcp.pop %v859
          %v862 = vrot.slane %v860, 6
          %v864 = vmul.f32 %v858, %v862
          %v865 = vmul.f32 %v864, 0.5
          %v866 = vmul.f32 %v865, %v865
          %v868 = vperm.slane %v866, 2
          %v869 = vperm.slane %v866, 6
          %vm872 = vcmask 1040384
          %v873 = vsel %vm872, %v868, 0.0
          %v874 = vsel %vm872, %v869, 0.0
          %v875 = vadd.f32 %v873, %v874
          %876 = vadd.xlane.f32.xlu0 %v875
          %v877 = vpop.xlane.xlu0 %876
          %v878 = vrot.slane %v877, 4
          %v879 = vadd.f32 %v877, %v878
          %v880 = vrot.slane %v879, 2
          %v881 = vadd.f32 %v879, %v880
          %v882 = vrot.slane %v881, 1
          %v883 = vadd.f32 %v881, %v882
          %s884 = vtos %v883
          %v885 = vperm.slane %v866, 3
          %v886 = vperm.slane %v866, 7
          %v889 = vsel %vm872, %v885, 0.0
          %v890 = vsel %vm872, %v886, 0.0
          %v891 = vadd.f32 %v889, %v890
          %892 = vadd.xlane.f32.xlu0 %v891
          %v893 = vpop.xlane.xlu0 %892
          %v894 = vrot.slane %v893, 4
          %v895 = vadd.f32 %v893, %v894
          %v896 = vrot.slane %v895, 2
          %v897 = vadd.f32 %v895, %v896
          %v898 = vrot.slane %v897, 1
          %v899 = vadd.f32 %v897, %v898
          %s900 = vtos %v899
          %s901 = sadd.f32 %s884, %s900
          %v903 = vrot.slane %v858, 5
          %v904 = vrot.slane %v903, 4
          %v906 = vadd.f32 %v858, %v904
          %vm907 = vcmp.ne.f32.partialorder %v906, 0.0
          %v908 = vsel %vm907, 1, 0
          %v909 = vcvt.s32.f32 %v908
          %v911 = vperm.slane %v909, 0
          %v912 = vperm.slane %v909, 4
          %v915 = vsel %vm872, %v911, 0.0
          %v916 = vsel %vm872, %v912, 0.0
          %v917 = vadd.f32 %v915, %v916
          %918 = vadd.xlane.f32.xlu0 %v917
          %v919 = vpop.xlane.xlu0 %918
          %v920 = vrot.slane %v919, 4
          %v921 = vadd.f32 %v919, %v920
          %v922 = vrot.slane %v921, 2
          %v923 = vadd.f32 %v921, %v922
          %v924 = vrot.slane %v923, 1
          %v925 = vadd.f32 %v923, %v924
          %s926 = vtos %v925
          %v927 = vld [vmem:[#allocation3] sm:$0xff]
          %v928 = vadd.f32 %v927, 1e-09
          %v929 = vrcp.pop %v928
          %v931 = vrot.slane %v929, 6
          %v933 = vmul.f32 %v927, %v931
          %v934 = vmul.f32 %v933, 0.5
          %v935 = vmul.f32 %v934, %v934
          %v937 = vperm.slane %v935, 2
          %v938 = vperm.slane %v935, 6
          %v941 = vsel %vm872, %v937, 0.0
          %v942 = vsel %vm872, %v938, 0.0
          %v943 = vadd.f32 %v941, %v942
          %944 = vadd.xlane.f32.xlu0 %v943
          %v945 = vpop.xlane.xlu0 %944
          %v946 = vrot.slane %v945, 4
          %v947 = vadd.f32 %v945, %v946
          %v948 = vrot.slane %v947, 2
          %v949 = vadd.f32 %v947, %v948
          %v950 = vrot.slane %v949, 1
          %v951 = vadd.f32 %v949, %v950
          %s952 = vtos %v951
          %v953 = vperm.slane %v935, 3
          %v954 = vperm.slane %v935, 7
          %v957 = vsel %vm872, %v953, 0.0
          %v958 = vsel %vm872, %v954, 0.0
          %v959 = vadd.f32 %v957, %v958
          %960 = vadd.xlane.f32.xlu0 %v959
          %v961 = vpop.xlane.xlu0 %960
          %v962 = vrot.slane %v961, 4
          %v963 = vadd.f32 %v961, %v962
          %v964 = vrot.slane %v963, 2
          %v965 = vadd.f32 %v963, %v964
          %v966 = vrot.slane %v965, 1
          %v967 = vadd.f32 %v965, %v966
          %s968 = vtos %v967
          %s969 = sadd.f32 %s952, %s968
          %v971 = vrot.slane %v927, 5
          %v972 = vrot.slane %v971, 4
          %v974 = vadd.f32 %v927, %v972
          %vm975 = vcmp.ne.f32.partialorder %v974, 0.0
          %v976 = vsel %vm975, 1, 0
          %v977 = vcvt.s32.f32 %v976
          %v979 = vperm.slane %v977, 0
          %v980 = vperm.slane %v977, 4
          %v983 = vsel %vm872, %v979, 0.0
          %v984 = vsel %vm872, %v980, 0.0
          %v985 = vadd.f32 %v983, %v984
          %986 = vadd.xlane.f32.xlu0 %v985
          %v987 = vpop.xlane.xlu0 %986
          %v988 = vrot.slane %v987, 4
          %v989 = vadd.f32 %v987, %v988
          %v990 = vrot.slane %v989, 2
          %v991 = vadd.f32 %v989, %v990
          %v992 = vrot.slane %v991, 1
          %v993 = vadd.f32 %v991, %v992
          %s994 = vtos %v993
          %vm995 = vcmp.eq.s32.totalorder %v396, 0
          %v996 = vstv %s901
          %v997 = vsel %vm995, %v996, 0.0
          %v998 = vadd.f32 %v997, 0.0
          %vm999 = vcmp.eq.s32.totalorder %v396, 1
          %v1000 = vstv %s926
          %v1001 = vsel %vm999, %v1000, 0.0
          %v1002 = vadd.f32 %v998, %v1001
          %vm1003 = vcmp.eq.s32.totalorder %v396, 2
          %v1004 = vstv %s969
          %v1005 = vsel %vm1003, %v1004, 0.0
          %v1006 = vadd.f32 %v1002, %v1005
          %vm1007 = vcmp.eq.s32.totalorder %v396, 3
          %v1008 = vstv %s994
          %v1009 = vsel %vm1007, %v1008, 0.0
          %v1010 = vadd.f32 %v1006, %v1009
          %1011 = vst [vmem:[%s338] sm:$0x1] %v1010
        $region44: #{tpu_custom_call.1} parent=35 // pred_fallthru
          _
        %s1012 = sand.u32 %s176, 1
        %s1013 = scalar_lea.sflag [#allocation5], %s1012
        %s1014 = sand.u32 %s176, 1
        %s1015 = scalar_lea.vmem [#allocation4], %s1014
        // Predicated region
        $region45: #{tpu_custom_call.1} parent=35 // pred_check
          %p1016 = pneg %p186
        $region46: #{tpu_custom_call.1} parent=35 // pred_check_branch
          %1018 = sbr.rel (%p1016) target = $region48
        $region47: #{tpu_custom_call.1} parent=35 // pred_region
          %1020 = vsyncadd %s1013, 0
          %s1021 = sadd.s32 %s26, %s25
          %s1022 = smul.addr %s24, 2
          %s1023 = sadd.s32 %s1021, %s1022
          %s1024 = scalar_lea.hbm %s4, %s1023
          %s1026 = sshll.u32 %s1015, 4
          %s1027 = int_to_ptr.vmem [resolvable:$true] %s1026
          %s1028 = sshll.u32 %s1024, 4
          %s1029 = int_to_ptr.hbm [resolvable:$true] %s1028
          %1031 = dma.vmem_to_hbm [thread:$0]  %s1027, 16, %s1029, %s1013
        $region48: #{tpu_custom_call.1} parent=35 // pred_fallthru
          _
      $region36: #{tpu_custom_call.1} parent=5 // pred_fallthru
        _
      %p1032 = scmp.le.s32.totalorder 2, %s13
      // Predicated region
      $region49: #{tpu_custom_call.1} parent=5 // pred_check
        %p1033 = pneg %p1032
      $region50: #{tpu_custom_call.1} parent=5 // pred_check_branch
        %1035 = sbr.rel (%p1033) target = $region52
      $region51: #{tpu_custom_call.1} parent=5 // pred_region
        %s1036 = ssub.s32 %s13, 2
        // Predicated region
        $region53: #{tpu_custom_call.1} parent=51 // pred_check
          %p1037 = pneg %p192
        $region54: #{tpu_custom_call.1} parent=51 // pred_check_branch
          %1039 = sbr.rel (%p1037) target = $region56
        $region55: #{tpu_custom_call.1} parent=51 // pred_region
          %s1040 = sand.u32 %s177, 1
          %s1041 = scalar_lea.sflag [#allocation5], %s1040
          %s1042 = sand.u32 %s177, 1
          %s1043 = scalar_lea.vmem [#allocation4], %s1042
          %1045 = dma.done %s1041, 16
        $region56: #{tpu_custom_call.1} parent=51 // pred_fallthru
          _
      $region52: #{tpu_custom_call.1} parent=5 // pred_fallthru
        _
    $region6: #{tpu_custom_call.1} parent=1 // loop_footer
      %s17 = sadd.s32 1, %s13
    $region7: #{tpu_custom_call.1} parent=1 // loop_footer_branch
      %12 = sbr.rel target = $region3
    $region8: #{tpu_custom_call.1} parent=1 // loop_exit
      _
    %1046 = vsyncpa [#allocation5], 1
    %s1047 = scalar_lea.sflag [#allocation5], 1
    %1048 = vsyncpa %s1047, 1

// kernel: tpu_custom_call.1
$region0: #{tpu_custom_call.1}
  #allocation0 [shape = 'u32[]', space=smem, size = 0x4, offset = 0x4, fixed_abs, tag = 'smem constant byte address 0x4 - core index']
  #allocation1 [shape = 'u32[72,128]{1,0:T(1,128)}', space=vmem, size = 0x9000, scoped, tag = 'internal scratch']
  #allocation2 [shape = 'f32[4,256]{1,0:T(4,128)}', space=vmem, size = 0x1000, scoped, tag = 'scratch operand']
  #allocation3 [shape = 'f32[4,256]{1,0:T(4,128)}', space=vmem, size = 0x1000, scoped, tag = 'scratch operand']
  %s0 = inlined_call_operand.vmem [shape: s32[2,2,128,1], index: 0, kind: input, shape index: {}]
  %s1 = inlined_call_operand.vmem [shape: bf16[2,2,4,128], index: 1, kind: input, shape index: {}]
  %s2 = inlined_call_operand.vmem [shape: s32[2,2,128,1], index: 2, kind: input, shape index: {}]
  %s3 = inlined_call_operand.vmem [shape: bf16[2,2,4,128], index: 3, kind: input, shape index: {}]
  %s4 = inlined_call_operand.hbm [shape: f32[2,2,1,1,128], index: 4, kind: output, shape index: {}]
  %s5 = sld [smem:[#allocation0]]
  $region57: #{tpu_custom_call.1} parent=0
    _
  %s7 = ssub.s32 1, %s5
  %s8 = scalar_select 0, %s7, %s5
  $region1: #{tpu_custom_call.1} parent=0
    #allocation4 [shape = 'u8[1024]{0}', space=vmem, size = 0x400, scoped, tag = 'output window, operand 0']
    #allocation5 [shape = 's32[2]{0}', space=sflag, size = 0x8, scoped, tag = 'scoped memory for tpu_custom_call.1']
    %9 = vsyncpa [#allocation5], 0
    %s10 = scalar_lea.sflag [#allocation5], 1
    %11 = vsyncpa %s10, 0
    loop: start=0, step=1, limit=6
    $region2: #{tpu_custom_call.1} parent=1 // loop_pre_header
      _
    $region3: #{tpu_custom_call.1} parent=1 // loop_header
      %s13 = sphi 0, %s17
      %p14 = scmp.ge.s32.totalorder %s13, 6
      %s20 = sphi 0, %s46
      %s21 = sphi 0, %s42
      %s22 = sphi 0, %s38
      %s23 = sphi 0, %s34
      %s24 = sphi 0, %s20
      %s25 = sphi 0, %s21
      %s26 = sphi 0, %s22
      %s27 = sphi 0, %s23
      %s28 = sphi 0, %s24
      %s29 = sphi 0, %s25
      %s30 = sphi 0, %s26
      %s31 = sphi 0, %s27
      %s53 = sphi 0, %s55
      %s56 = sphi 0, %s53
      %s57 = sphi 0, %s56
      %s73 = sphi 0, %s57
      %s83 = sphi 0, %s85
      %s86 = sphi 0, %s83
      %s87 = sphi 0, %s86
      %s103 = sphi 0, %s87
      %s113 = sphi 0, %s115
      %s116 = sphi 0, %s113
      %s117 = sphi 0, %s116
      %s133 = sphi 0, %s117
      %s143 = sphi 0, %s145
      %s146 = sphi 0, %s143
      %s147 = sphi 0, %s146
      %s163 = sphi 0, %s147
      %s173 = sphi 0, %s175
      %s176 = sphi 0, %s173
      %s177 = sphi 0, %s176
      %s193 = sphi 0, %s177
    $region4: #{tpu_custom_call.1} parent=1 // loop_header_branch
      %16 = sbr.rel (%p14) target = $region8
    $region5: #{tpu_custom_call.1} parent=1 // loop_body
      %s18 = ssub.s32 %s13, 1
      %s19 = ssub.s32 %s13, 2
      %s32 = sadd.s32 1, %s23
      %p33 = scmp.ge.s32.totalorder %s32, 1
      %s34 = scalar_select %p33, 0, %s32
      %s35 = sadd.s32 1, %s22
      %s36 = scalar_select %p33, %s35, %s22
      %p37 = scmp.ge.s32.totalorder %s36, 1
      %s38 = scalar_select %p37, 0, %s36
      %s39 = sadd.s32 1, %s21
      %s40 = scalar_select %p37, %s39, %s21
      %p41 = scmp.ge.s32.totalorder %s40, 2
      %s42 = scalar_select %p41, 0, %s40
      %s43 = sadd.s32 1, %s20
      %s44 = scalar_select %p41, %s43, %s20
      %p45 = scmp.ge.s32.totalorder %s44, 2
      %s46 = scalar_select %p45, 0, %s44
      %s47 = ssub.s32 %s20, %s46
      %s48 = ssub.s32 %s21, %s42
      %s49 = sor.u32 %s47, %s48
      %s50 = ssub.s32 %s23, %s34
      %s51 = sor.u32 %s49, %s50
      %p52 = scmp.eq.s32.totalorder %s51, 0
      %s54 = sadd.s32 %s53, 1
      %s55 = scalar_select %p52, %s53, %s54
      %p58 = pneg %p52
      %p59 = scmp.eq.s32.totalorder %s13, 3
      %p60 = por %p58, %p59
      %p61 = scmp.ne.s32.totalorder %s53, %s56
      %p62 = scmp.eq.s32.totalorder %s13, 0
      %p63 = por %p61, %p62
      %p64 = scmp.ne.s32.totalorder %s53, %s56
      %p65 = scmp.eq.s32.totalorder %s18, 3
      %p66 = por %p64, %p65
      %p67 = scmp.ne.s32.totalorder %s56, %s57
      %p68 = scmp.eq.s32.totalorder %s18, 0
      %p69 = por %p67, %p68
      %p70 = scmp.ne.s32.totalorder %s56, %s57
      %p71 = scmp.eq.s32.totalorder %s19, 3
      %p72 = por %p70, %p71
      %p74 = scmp.ne.s32.totalorder %s57, %s73
      %p75 = scmp.eq.s32.totalorder %s19, 0
      %p76 = por %p74, %p75
      %s77 = ssub.s32 %s20, %s46
      %s78 = ssub.s32 %s21, %s42
      %s79 = sor.u32 %s77, %s78
      %s80 = ssub.s32 %s23, %s34
      %s81 = sor.u32 %s79, %s80
      %p82 = scmp.eq.s32.totalorder %s81, 0
      %s84 = sadd.s32 %s83, 1
      %s85 = scalar_select %p82, %s83, %s84
      %p88 = pneg %p82
      %p89 = scmp.eq.s32.totalorder %s13, 3
      %p90 = por %p88, %p89
      %p91 = scmp.ne.s32.totalorder %s83, %s86
      %p92 = scmp.eq.s32.totalorder %s13, 0
      %p93 = por %p91, %p92
      %p94 = scmp.ne.s32.totalorder %s83, %s86
      %p95 = scmp.eq.s32.totalorder %s18, 3
      %p96 = por %p94, %p95
      %p97 = scmp.ne.s32.totalorder %s86, %s87
      %p98 = scmp.eq.s32.totalorder %s18, 0
      %p99 = por %p97, %p98
      %p100 = scmp.ne.s32.totalorder %s86, %s87
      %p101 = scmp.eq.s32.totalorder %s19, 3
      %p102 = por %p100, %p101
      %p104 = scmp.ne.s32.totalorder %s87, %s103
      %p105 = scmp.eq.s32.totalorder %s19, 0
      %p106 = por %p104, %p105
      %s107 = ssub.s32 %s20, %s46
      %s108 = ssub.s32 %s21, %s42
      %s109 = sor.u32 %s107, %s108
      %s110 = ssub.s32 %s23, %s34
      %s111 = sor.u32 %s109, %s110
      %p112 = scmp.eq.s32.totalorder %s111, 0
      %s114 = sadd.s32 %s113, 1
      %s115 = scalar_select %p112, %s113, %s114
      %p118 = pneg %p112
      %p119 = scmp.eq.s32.totalorder %s13, 3
      %p120 = por %p118, %p119
      %p121 = scmp.ne.s32.totalorder %s113, %s116
      %p122 = scmp.eq.s32.totalorder %s13, 0
      %p123 = por %p121, %p122
      %p124 = scmp.ne.s32.totalorder %s113, %s116
      %p125 = scmp.eq.s32.totalorder %s18, 3
      %p126 = por %p124, %p125
      %p127 = scmp.ne.s32.totalorder %s116, %s117
      %p128 = scmp.eq.s32.totalorder %s18, 0
      %p129 = por %p127, %p128
      %p130 = scmp.ne.s32.totalorder %s116, %s117
      %p131 = scmp.eq.s32.totalorder %s19, 3
      %p132 = por %p130, %p131
      %p134 = scmp.ne.s32.totalorder %s117, %s133
      %p135 = scmp.eq.s32.totalorder %s19, 0
      %p136 = por %p134, %p135
      %s137 = ssub.s32 %s20, %s46
      %s138 = ssub.s32 %s21, %s42
      %s139 = sor.u32 %s137, %s138
      %s140 = ssub.s32 %s23, %s34
      %s141 = sor.u32 %s139, %s140
      %p142 = scmp.eq.s32.totalorder %s141, 0
      %s144 = sadd.s32 %s143, 1
      %s145 = scalar_select %p142, %s143, %s144
      %p148 = pneg %p142
      %p149 = scmp.eq.s32.totalorder %s13, 3
      %p150 = por %p148, %p149
      %p151 = scmp.ne.s32.totalorder %s143, %s146
      %p152 = scmp.eq.s32.totalorder %s13, 0
      %p153 = por %p151, %p152
      %p154 = scmp.ne.s32.totalorder %s143, %s146
      %p155 = scmp.eq.s32.totalorder %s18, 3
      %p156 = por %p154, %p155
      %p157 = scmp.ne.s32.totalorder %s146, %s147
      %p158 = scmp.eq.s32.totalorder %s18, 0
      %p159 = por %p157, %p158
      %p160 = scmp.ne.s32.totalorder %s146, %s147
      %p161 = scmp.eq.s32.totalorder %s19, 3
      %p162 = por %p160, %p161
      %p164 = scmp.ne.s32.totalorder %s147, %s163
      %p165 = scmp.eq.s32.totalorder %s19, 0
      %p166 = por %p164, %p165
      %s167 = ssub.s32 %s20, %s46
      %s168 = ssub.s32 %s21, %s42
      %s169 = sor.u32 %s167, %s168
      %s170 = ssub.s32 %s22, %s38
      %s171 = sor.u32 %s169, %s170
      %p172 = scmp.eq.s32.totalorder %s171, 0
      %s174 = sadd.s32 %s173, 1
      %s175 = scalar_select %p172, %s173, %s174
      %p178 = pneg %p172
      %p179 = scmp.eq.s32.totalorder %s13, 3
      %p180 = por %p178, %p179
      %p181 = scmp.ne.s32.totalorder %s173, %s176
      %p182 = scmp.eq.s32.totalorder %s13, 0
      %p183 = por %p181, %p182
      %p184 = scmp.ne.s32.totalorder %s173, %s176
      %p185 = scmp.eq.s32.totalorder %s18, 3
      %p186 = por %p184, %p185
      %p187 = scmp.ne.s32.totalorder %s176, %s177
      %p188 = scmp.eq.s32.totalorder %s18, 0
      %p189 = por %p187, %p188
      %p190 = scmp.ne.s32.totalorder %s176, %s177
      %p191 = scmp.eq.s32.totalorder %s19, 3
      %p192 = por %p190, %p191
      %p194 = scmp.ne.s32.totalorder %s177, %s193
      %p195 = scmp.eq.s32.totalorder %s19, 0
      %p196 = por %p194, %p195
      %p197 = scmp.le.s32.totalorder 1, %s13
      %p198 = scmp.lt.s32.totalorder %s13, 5
      %p199 = pnand %p197, %p198
      %p200 = pneg %p199
      // Predicated region
      $region9: #{tpu_custom_call.1} parent=5 // pred_check
        _
      $region10: #{tpu_custom_call.1} parent=5 // pred_check_branch
        %202 = sbr.rel (%p199) target = $region12
      $region11: #{tpu_custom_call.1} parent=5 // pred_region
        %s203 = ssub.s32 %s13, 1
      $region12: #{tpu_custom_call.1} parent=5 // pred_fallthru
        _
      %p204 = scmp.lt.s32.totalorder %s13, 4
      // Predicated region
      $region13: #{tpu_custom_call.1} parent=5 // pred_check
        %p205 = pneg %p204
      $region14: #{tpu_custom_call.1} parent=5 // pred_check_branch
        %207 = sbr.rel (%p205) target = $region16
      $region15: #{tpu_custom_call.1} parent=5 // pred_region
        // Predicated region
        $region17: #{tpu_custom_call.1} parent=15 // pred_check
          %p208 = pneg %p63
        $region18: #{tpu_custom_call.1} parent=15 // pred_check_branch
          %210 = sbr.rel (%p208) target = $region20
        $region19: #{tpu_custom_call.1} parent=15 // pred_region
          %s211 = smul.u32 16, %s23
          %p212 = scmp.lt.s32.totalorder %s20, 1
          %s213 = scalar_select %p212, %s20, 1
          %p214 = scmp.lt.s32.totalorder %s21, 1
          %s215 = scalar_select %p214, %s21, 1
          %p216 = scmp.lt.s32.totalorder %s211, 15
          %s217 = scalar_select %p216, %s211, 15
          %s218 = smul.addr %s215, 16
          %s219 = sadd.s32 %s217, %s218
          %s220 = smul.addr %s213, 32
          %s221 = sadd.s32 %s219, %s220
          %s222 = smul.addr %s221, 8
          %s223 = scalar_lea.vmem %s0, %s222
          %s224 = smul.u32 16, %s23
        $region20: #{tpu_custom_call.1} parent=15 // pred_fallthru
          _
        // Predicated region
        $region21: #{tpu_custom_call.1} parent=15 // pred_check
          %p225 = pneg %p93
        $region22: #{tpu_custom_call.1} parent=15 // pred_check_branch
          %227 = sbr.rel (%p225) target = $region24
        $region23: #{tpu_custom_call.1} parent=15 // pred_region
          %p228 = scmp.lt.s32.totalorder %s20, 1
          %s229 = scalar_select %p228, %s20, 1
          %p230 = scmp.lt.s32.totalorder %s21, 1
          %s231 = scalar_select %p230, %s21, 1
          %p232 = scmp.lt.s32.totalorder %s23, 0
          %s233 = scalar_select %p232, %s23, 0
          %s234 = sadd.s32 %s233, %s231
          %s235 = smul.addr %s229, 2
          %s236 = sadd.s32 %s234, %s235
          %s237 = smul.addr %s236, 2
          %s238 = scalar_lea.vmem %s1, %s237
        $region24: #{tpu_custom_call.1} parent=15 // pred_fallthru
          _
        // Predicated region
        $region25: #{tpu_custom_call.1} parent=15 // pred_check
          %p239 = pneg %p123
        $region26: #{tpu_custom_call.1} parent=15 // pred_check_branch
          %241 = sbr.rel (%p239) target = $region28
        $region27: #{tpu_custom_call.1} parent=15 // pred_region
          %s242 = smul.u32 16, %s23
          %p243 = scmp.lt.s32.totalorder %s20, 1
          %s244 = scalar_select %p243, %s20, 1
          %p245 = scmp.lt.s32.totalorder %s21, 1
          %s246 = scalar_select %p245, %s21, 1
          %p247 = scmp.lt.s32.totalorder %s242, 15
          %s248 = scalar_select %p247, %s242, 15
          %s249 = smul.addr %s246, 16
          %s250 = sadd.s32 %s248, %s249
          %s251 = smul.addr %s244, 32
          %s252 = sadd.s32 %s250, %s251
          %s253 = smul.addr %s252, 8
          %s254 = scalar_lea.vmem %s2, %s253
          %s255 = smul.u32 16, %s23
        $region28: #{tpu_custom_call.1} parent=15 // pred_fallthru
          _
        // Predicated region
        $region29: #{tpu_custom_call.1} parent=15 // pred_check
          %p256 = pneg %p153
        $region30: #{tpu_custom_call.1} parent=15 // pred_check_branch
          %258 = sbr.rel (%p256) target = $region32
        $region31: #{tpu_custom_call.1} parent=15 // pred_region
          %p259 = scmp.lt.s32.totalorder %s20, 1
          %s260 = scalar_select %p259, %s20, 1
          %p261 = scmp.lt.s32.totalorder %s21, 1
          %s262 = scalar_select %p261, %s21, 1
          %p263 = scmp.lt.s32.totalorder %s23, 0
          %s264 = scalar_select %p263, %s23, 0
          %s265 = sadd.s32 %s264, %s262
          %s266 = smul.addr %s260, 2
          %s267 = sadd.s32 %s265, %s266
          %s268 = smul.addr %s267, 2
          %s269 = scalar_lea.vmem %s3, %s268
        $region32: #{tpu_custom_call.1} parent=15 // pred_fallthru
          _
      $region16: #{tpu_custom_call.1} parent=5 // pred_fallthru
        _
      %p270 = scmp.le.s32.totalorder 1, %s13
      %p271 = scmp.lt.s32.totalorder %s13, 5
      %p272 = pnand %p270, %p271
      %p273 = pneg %p272
      // Predicated region
      $region33: #{tpu_custom_call.1} parent=5 // pred_check
        _
      $region34: #{tpu_custom_call.1} parent=5 // pred_check_branch
        %275 = sbr.rel (%p272) target = $region36
      $region35: #{tpu_custom_call.1} parent=5 // pred_region
        %s276 = ssub.s32 %s13, 1
        %s277 = smul.u32 16, %s27
        %p278 = scmp.lt.s32.totalorder %s24, 1
        %s279 = scalar_select %p278, %s24, 1
        %p280 = scmp.lt.s32.totalorder %s25, 1
        %s281 = scalar_select %p280, %s25, 1
        %p282 = scmp.lt.s32.totalorder %s277, 15
        %s283 = scalar_select %p282, %s277, 15
        %s284 = smul.addr %s281, 16
        %s285 = sadd.s32 %s283, %s284
        %s286 = smul.addr %s279, 32
        %s287 = sadd.s32 %s285, %s286
        %s288 = smul.addr %s287, 8
        %s289 = scalar_lea.vmem %s0, %s288
        %p290 = pneg %p69
        %p291 = pneg %p66
        %p292 = scmp.lt.s32.totalorder %s24, 1
        %s293 = scalar_select %p292, %s24, 1
        %p294 = scmp.lt.s32.totalorder %s25, 1
        %s295 = scalar_select %p294, %s25, 1
        %p296 = scmp.lt.s32.totalorder %s27, 0
        %s297 = scalar_select %p296, %s27, 0
        %s298 = sadd.s32 %s297, %s295
        %s299 = smul.addr %s293, 2
        %s300 = sadd.s32 %s298, %s299
        %s301 = smul.addr %s300, 2
        %s302 = scalar_lea.vmem %s1, %s301
        %p303 = pneg %p99
        %p304 = pneg %p96
        %s305 = smul.u32 16, %s27
        %p306 = scmp.lt.s32.totalorder %s24, 1
        %s307 = scalar_select %p306, %s24, 1
        %p308 = scmp.lt.s32.totalorder %s25, 1
        %s309 = scalar_select %p308, %s25, 1
        %p310 = scmp.lt.s32.totalorder %s305, 15
        %s311 = scalar_select %p310, %s305, 15
        %s312 = smul.addr %s309, 16
        %s313 = sadd.s32 %s311, %s312
        %s314 = smul.addr %s307, 32
        %s315 = sadd.s32 %s313, %s314
        %s316 = smul.addr %s315, 8
        %s317 = scalar_lea.vmem %s2, %s316
        %p318 = pneg %p129
        %p319 = pneg %p126
        %p320 = scmp.lt.s32.totalorder %s24, 1
        %s321 = scalar_select %p320, %s24, 1
        %p322 = scmp.lt.s32.totalorder %s25, 1
        %s323 = scalar_select %p322, %s25, 1
        %p324 = scmp.lt.s32.totalorder %s27, 0
        %s325 = scalar_select %p324, %s27, 0
        %s326 = sadd.s32 %s325, %s323
        %s327 = smul.addr %s321, 2
        %s328 = sadd.s32 %s326, %s327
        %s329 = smul.addr %s328, 2
        %s330 = scalar_lea.vmem %s3, %s329
        %p331 = pneg %p159
        %p332 = pneg %p156
        %p333 = pneg %p189
        %p334 = pneg %p186
        %s335 = sand.u32 %s176, 1
        %s336 = scalar_lea.sflag [#allocation5], %s335
        %s337 = sand.u32 %s176, 1
        %s338 = scalar_lea.vmem [#allocation4], %s337
        %s339 = smul.u32 16, %s27
        %p340 = scmp.lt.s32.totalorder %s24, 1
        %s341 = scalar_select %p340, %s24, 1
        %p342 = scmp.lt.s32.totalorder %s25, 1
        %s343 = scalar_select %p342, %s25, 1
        %p344 = scmp.lt.s32.totalorder %s339, 15
        %s345 = scalar_select %p344, %s339, 15
        %s346 = smul.addr %s343, 16
        %s347 = sadd.s32 %s345, %s346
        %s348 = smul.addr %s341, 32
        %s349 = sadd.s32 %s347, %s348
        %s350 = smul.addr %s349, 8
        %s351 = scalar_lea.vmem %s0, %s350
        %s352 = smul.u32 16, %s27
        %p353 = scmp.lt.s32.totalorder %s24, 1
        %s354 = scalar_select %p353, %s24, 1
        %p355 = scmp.lt.s32.totalorder %s25, 1
        %s356 = scalar_select %p355, %s25, 1
        %p357 = scmp.lt.s32.totalorder %s27, 0
        %s358 = scalar_select %p357, %s27, 0
        %s359 = sadd.s32 %s358, %s356
        %s360 = smul.addr %s354, 2
        %s361 = sadd.s32 %s359, %s360
        %s362 = smul.addr %s361, 2
        %s363 = scalar_lea.vmem %s1, %s362
        %s364 = smul.u32 16, %s27
        %p365 = scmp.lt.s32.totalorder %s24, 1
        %s366 = scalar_select %p365, %s24, 1
        %p367 = scmp.lt.s32.totalorder %s25, 1
        %s368 = scalar_select %p367, %s25, 1
        %p369 = scmp.lt.s32.totalorder %s364, 15
        %s370 = scalar_select %p369, %s364, 15
        %s371 = smul.addr %s368, 16
        %s372 = sadd.s32 %s370, %s371
        %s373 = smul.addr %s366, 32
        %s374 = sadd.s32 %s372, %s373
        %s375 = smul.addr %s374, 8
        %s376 = scalar_lea.vmem %s2, %s375
        %s377 = smul.u32 16, %s27
        %p378 = scmp.lt.s32.totalorder %s24, 1
        %s379 = scalar_select %p378, %s24, 1
        %p380 = scmp.lt.s32.totalorder %s25, 1
        %s381 = scalar_select %p380, %s25, 1
        %p382 = scmp.lt.s32.totalorder %s27, 0
        %s383 = scalar_select %p382, %s27, 0
        %s384 = sadd.s32 %s383, %s381
        %s385 = smul.addr %s379, 2
        %s386 = sadd.s32 %s384, %s385
        %s387 = smul.addr %s386, 2
        %s388 = scalar_lea.vmem %s3, %s387
        %p389 = scmp.eq.s32.totalorder %s27, 0
        // Predicated region
        $region37: #{tpu_custom_call.1} parent=35 // pred_check
          %p390 = pneg %p389
        $region38: #{tpu_custom_call.1} parent=35 // pred_check_branch
          %392 = sbr.rel (%p390) target = $region40
        $region39: #{tpu_custom_call.1} parent=35 // pred_region
          %393 = vst [vmem:[#allocation2] sm:$0xff] 0.0
          %394 = vst [vmem:[#allocation3] sm:$0xff] 0.0
        $region40: #{tpu_custom_call.1} parent=35 // pred_fallthru
          _
        %v395 = vlaneseq
        %v396 = vand.u32 %v395, 127
        %v397 = vadd.s32 %v396, 128
        %s398 = smul.u32 %s26, 256
        %v399 = vld [vmem:[%s351] sm:$0xff]
        %v400 = vld [vmem:[%s351 + $0x8] sm:$0xff]
        %v401 = vld [vmem:[%s351 + $0x10] sm:$0xff]
        %v402 = vld [vmem:[%s351 + $0x18] sm:$0xff]
        %v403 = vld [vmem:[%s351 + $0x20] sm:$0xff]
        %v404 = vld [vmem:[%s351 + $0x28] sm:$0xff]
        %v405 = vld [vmem:[%s351 + $0x30] sm:$0xff]
        %v406 = vld [vmem:[%s351 + $0x38] sm:$0xff]
        %v407 = vld [vmem:[%s351 + $0x40] sm:$0xff]
        %v408 = vld [vmem:[%s351 + $0x48] sm:$0xff]
        %v409 = vld [vmem:[%s351 + $0x50] sm:$0xff]
        %v410 = vld [vmem:[%s351 + $0x58] sm:$0xff]
        %v411 = vld [vmem:[%s351 + $0x60] sm:$0xff]
        %v412 = vld [vmem:[%s351 + $0x68] sm:$0xff]
        %v413 = vld [vmem:[%s351 + $0x70] sm:$0xff]
        %v414 = vld [vmem:[%s351 + $0x78] sm:$0xff]
        %v415 = vstv %s398
        %v416 = vsub.s32 %v399, %v415
        %v417 = vsub.s32 %v400, %v415
        %v418 = vsub.s32 %v401, %v415
        %v419 = vsub.s32 %v402, %v415
        %v420 = vsub.s32 %v403, %v415
        %v421 = vsub.s32 %v404, %v415
        %v422 = vsub.s32 %v405, %v415
        %v423 = vsub.s32 %v406, %v415
        %v424 = vsub.s32 %v407, %v415
        %v425 = vsub.s32 %v408, %v415
        %v426 = vsub.s32 %v409, %v415
        %v427 = vsub.s32 %v410, %v415
        %v428 = vsub.s32 %v411, %v415
        %v429 = vsub.s32 %v412, %v415
        %v430 = vsub.s32 %v413, %v415
        %v431 = vsub.s32 %v414, %v415
        %432 = vset.pattern.permute.xlu0 0
        %433 = vperm.xlu0 %432, %v416
        %v434 = vpop.permute.xlu0 %433
        %435 = vset.pattern.permute.xlu0 0
        %436 = vperm.xlu0 %435, %v417
        %v437 = vpop.permute.xlu0 %436
        %438 = vset.pattern.permute.xlu0 0
        %439 = vperm.xlu0 %438, %v418
        %v440 = vpop.permute.xlu0 %439
        %441 = vset.pattern.permute.xlu0 0
        %442 = vperm.xlu0 %441, %v419
        %v443 = vpop.permute.xlu0 %442
        %444 = vset.pattern.permute.xlu0 0
        %445 = vperm.xlu0 %444, %v420
        %v446 = vpop.permute.xlu0 %445
        %447 = vset.pattern.permute.xlu0 0
        %448 = vperm.xlu0 %447, %v421
        %v449 = vpop.permute.xlu0 %448
        %450 = vset.pattern.permute.xlu0 0
        %451 = vperm.xlu0 %450, %v422
        %v452 = vpop.permute.xlu0 %451
        %453 = vset.pattern.permute.xlu0 0
        %454 = vperm.xlu0 %453, %v423
        %v455 = vpop.permute.xlu0 %454
        %456 = vset.pattern.permute.xlu0 0
        %457 = vperm.xlu0 %456, %v424
        %v458 = vpop.permute.xlu0 %457
        %459 = vset.pattern.permute.xlu0 0
        %460 = vperm.xlu0 %459, %v425
        %v461 = vpop.permute.xlu0 %460
        %462 = vset.pattern.permute.xlu0 0
        %463 = vperm.xlu0 %462, %v426
        %v464 = vpop.permute.xlu0 %463
        %465 = vset.pattern.permute.xlu0 0
        %466 = vperm.xlu0 %465, %v427
        %v467 = vpop.permute.xlu0 %466
        %468 = vset.pattern.permute.xlu0 0
        %469 = vperm.xlu0 %468, %v428
        %v470 = vpop.permute.xlu0 %469
        %471 = vset.pattern.permute.xlu0 0
        %472 = vperm.xlu0 %471, %v429
        %v473 = vpop.permute.xlu0 %472
        %474 = vset.pattern.permute.xlu0 0
        %475 = vperm.xlu0 %474, %v430
        %v476 = vpop.permute.xlu0 %475
        %477 = vset.pattern.permute.xlu0 0
        %478 = vperm.xlu0 %477, %v431
        %v479 = vpop.permute.xlu0 %478
        %vm480 = vcmp.eq.s32.totalorder %v434, %v396
        %vm481 = vcmp.eq.s32.totalorder %v434, %v397
        %vm482 = vcmp.eq.s32.totalorder %v437, %v396
        %vm483 = vcmp.eq.s32.totalorder %v437, %v397
        %vm484 = vcmp.eq.s32.totalorder %v440, %v396
        %vm485 = vcmp.eq.s32.totalorder %v440, %v397
        %vm486 = vcmp.eq.s32.totalorder %v443, %v396
        %vm487 = vcmp.eq.s32.totalorder %v443, %v397
        %vm488 = vcmp.eq.s32.totalorder %v446, %v396
        %vm489 = vcmp.eq.s32.totalorder %v446, %v397
        %vm490 = vcmp.eq.s32.totalorder %v449, %v396
        %vm491 = vcmp.eq.s32.totalorder %v449, %v397
        %vm492 = vcmp.eq.s32.totalorder %v452, %v396
        %vm493 = vcmp.eq.s32.totalorder %v452, %v397
        %vm494 = vcmp.eq.s32.totalorder %v455, %v396
        %vm495 = vcmp.eq.s32.totalorder %v455, %v397
        %vm496 = vcmp.eq.s32.totalorder %v458, %v396
        %vm497 = vcmp.eq.s32.totalorder %v458, %v397
        %vm498 = vcmp.eq.s32.totalorder %v461, %v396
        %vm499 = vcmp.eq.s32.totalorder %v461, %v397
        %vm500 = vcmp.eq.s32.totalorder %v464, %v396
        %vm501 = vcmp.eq.s32.totalorder %v464, %v397
        %vm502 = vcmp.eq.s32.totalorder %v467, %v396
        %vm503 = vcmp.eq.s32.totalorder %v467, %v397
        %vm504 = vcmp.eq.s32.totalorder %v470, %v396
        %vm505 = vcmp.eq.s32.totalorder %v470, %v397
        %vm506 = vcmp.eq.s32.totalorder %v473, %v396
        %vm507 = vcmp.eq.s32.totalorder %v473, %v397
        %vm508 = vcmp.eq.s32.totalorder %v476, %v396
        %vm509 = vcmp.eq.s32.totalorder %v476, %v397
        %vm510 = vcmp.eq.s32.totalorder %v479, %v396
        %vm511 = vcmp.eq.s32.totalorder %v479, %v397
        %v512 = vsel %vm480, 1, 0
        %v513 = vsel %vm481, 1, 0
        %v514 = vsel %vm482, 1, 0
        %v515 = vsel %vm483, 1, 0
        %v516 = vsel %vm484, 1, 0
        %v517 = vsel %vm485, 1, 0
        %v518 = vsel %vm486, 1, 0
        %v519 = vsel %vm487, 1, 0
        %v520 = vsel %vm488, 1, 0
        %v521 = vsel %vm489, 1, 0
        %v522 = vsel %vm490, 1, 0
        %v523 = vsel %vm491, 1, 0
        %v524 = vsel %vm492, 1, 0
        %v525 = vsel %vm493, 1, 0
        %v526 = vsel %vm494, 1, 0
        %v527 = vsel %vm495, 1, 0
        %v528 = vsel %vm496, 1, 0
        %v529 = vsel %vm497, 1, 0
        %v530 = vsel %vm498, 1, 0
        %v531 = vsel %vm499, 1, 0
        %v532 = vsel %vm500, 1, 0
        %v533 = vsel %vm501, 1, 0
        %v534 = vsel %vm502, 1, 0
        %v535 = vsel %vm503, 1, 0
        %v536 = vsel %vm504, 1, 0
        %v537 = vsel %vm505, 1, 0
        %v538 = vsel %vm506, 1, 0
        %v539 = vsel %vm507, 1, 0
        %v540 = vsel %vm508, 1, 0
        %v541 = vsel %vm509, 1, 0
        %v542 = vsel %vm510, 1, 0
        %v543 = vsel %vm511, 1, 0
        %v544 = vcvt.s32.f32 %v512
        %v545 = vcvt.s32.f32 %v513
        %v546 = vcvt.s32.f32 %v514
        %v547 = vcvt.s32.f32 %v515
        %v548 = vcvt.s32.f32 %v516
        %v549 = vcvt.s32.f32 %v517
        %v550 = vcvt.s32.f32 %v518
        %v551 = vcvt.s32.f32 %v519
        %v552 = vcvt.s32.f32 %v520
        %v553 = vcvt.s32.f32 %v521
        %v554 = vcvt.s32.f32 %v522
        %v555 = vcvt.s32.f32 %v523
        %v556 = vcvt.s32.f32 %v524
        %v557 = vcvt.s32.f32 %v525
        %v558 = vcvt.s32.f32 %v526
        %v559 = vcvt.s32.f32 %v527
        %v560 = vcvt.s32.f32 %v528
        %v561 = vcvt.s32.f32 %v529
        %v562 = vcvt.s32.f32 %v530
        %v563 = vcvt.s32.f32 %v531
        %v564 = vcvt.s32.f32 %v532
        %v565 = vcvt.s32.f32 %v533
        %v566 = vcvt.s32.f32 %v534
        %v567 = vcvt.s32.f32 %v535
        %v568 = vcvt.s32.f32 %v536
        %v569 = vcvt.s32.f32 %v537
        %v570 = vcvt.s32.f32 %v538
        %v571 = vcvt.s32.f32 %v539
        %v572 = vcvt.s32.f32 %v540
        %v573 = vcvt.s32.f32 %v541
        %v574 = vcvt.s32.f32 %v542
        %v575 = vcvt.s32.f32 %v543
        %v576 = vpack.c.bf16 %v546, %v544
        %v577 = vpack.c.bf16 %v547, %v545
        %v578 = vpack.c.bf16 %v550, %v548
        %v579 = vpack.c.bf16 %v551, %v549
        %v580 = vpack.c.bf16 %v554, %v552
        %v581 = vpack.c.bf16 %v555, %v553
        %v582 = vpack.c.bf16 %v558, %v556
        %v583 = vpack.c.bf16 %v559, %v557
        %v584 = vpack.c.bf16 %v562, %v560
        %v585 = vpack.c.bf16 %v563, %v561
        %v586 = vpack.c.bf16 %v566, %v564
        %v587 = vpack.c.bf16 %v567, %v565
        %v588 = vpack.c.bf16 %v570, %v568
        %v589 = vpack.c.bf16 %v571, %v569
        %v590 = vpack.c.bf16 %v574, %v572
        %v591 = vpack.c.bf16 %v575, %v573
        %v592 = vld [vmem:[#allocation2] sm:$0xff]
        %v593 = vld [vmem:[%s363] sm:$0x3]
        %594 = vmatpush.bf16.msra.mxu0 %v590
        %595 = vmatpush.bf16.msra.mxu0 %v588
        %596 = vmatpush.bf16.msra.mxu0 %v586
        %597 = vmatpush.bf16.msra.mxu0 %v584
        %598 = vmatpush.bf16.msra.mxu0 %v582
        %599 = vmatpush.bf16.msra.mxu0 %v580
        %600 = vmatpush.bf16.msra.mxu0 %v578
        %601 = vmatpush.bf16.msra.mxu0 %v576
        %602 = vmatmul.bf16.gmra.mxu0 %v593
        %v603 = vpop.f32.mrf.mxu0
        %v604 = vadd.f32 0.0, %v603
        %v605 = vpop.f32.mrf.mxu0
        %606 = vdwg.mxu0
        %607 = vmatpush.bf16.msra.mxu0 %v591
        %608 = vmatpush.bf16.msra.mxu0 %v589
        %609 = vmatpush.bf16.msra.mxu0 %v587
        %610 = vmatpush.bf16.msra.mxu0 %v585
        %611 = vmatpush.bf16.msra.mxu0 %v583
        %612 = vmatpush.bf16.msra.mxu0 %v581
        %613 = vmatpush.bf16.msra.mxu0 %v579
        %614 = vmatpush.bf16.msra.mxu0 %v577
        %615 = vmatmul.bf16.gmra.mxu0 %v593
        %v616 = vpop.f32.mrf.mxu0
        %v617 = vadd.f32 0.0, %v616
        %v618 = vpop.f32.mrf.mxu0
        %619 = vdwg.mxu0
        %v622 = vrot.slane %v617, 4
        %vm623 = vcmask 1043456
        %v624 = vsel %vm623, %v604, %v622
        %v626 = vadd.f32 %v592, %v624
        %627 = vst [vmem:[#allocation2] sm:$0xff] %v626
        %v628 = vld [vmem:[%s376] sm:$0xff]
        %v629 = vld [vmem:[%s376 + $0x8] sm:$0xff]
        %v630 = vld [vmem:[%s376 + $0x10] sm:$0xff]
        %v631 = vld [vmem:[%s376 + $0x18] sm:$0xff]
        %v632 = vld [vmem:[%s376 + $0x20] sm:$0xff]
        %v633 = vld [vmem:[%s376 + $0x28] sm:$0xff]
        %v634 = vld [vmem:[%s376 + $0x30] sm:$0xff]
        %v635 = vld [vmem:[%s376 + $0x38] sm:$0xff]
        %v636 = vld [vmem:[%s376 + $0x40] sm:$0xff]
        %v637 = vld [vmem:[%s376 + $0x48] sm:$0xff]
        %v638 = vld [vmem:[%s376 + $0x50] sm:$0xff]
        %v639 = vld [vmem:[%s376 + $0x58] sm:$0xff]
        %v640 = vld [vmem:[%s376 + $0x60] sm:$0xff]
        %v641 = vld [vmem:[%s376 + $0x68] sm:$0xff]
        %v642 = vld [vmem:[%s376 + $0x70] sm:$0xff]
        %v643 = vld [vmem:[%s376 + $0x78] sm:$0xff]
        %v644 = vsub.s32 %v628, %v415
        %v645 = vsub.s32 %v629, %v415
        %v646 = vsub.s32 %v630, %v415
        %v647 = vsub.s32 %v631, %v415
        %v648 = vsub.s32 %v632, %v415
        %v649 = vsub.s32 %v633, %v415
        %v650 = vsub.s32 %v634, %v415
        %v651 = vsub.s32 %v635, %v415
        %v652 = vsub.s32 %v636, %v415
        %v653 = vsub.s32 %v637, %v415
        %v654 = vsub.s32 %v638, %v415
        %v655 = vsub.s32 %v639, %v415
        %v656 = vsub.s32 %v640, %v415
        %v657 = vsub.s32 %v641, %v415
        %v658 = vsub.s32 %v642, %v415
        %v659 = vsub.s32 %v643, %v415
        %660 = vset.pattern.permute.xlu0 0
        %661 = vperm.xlu0 %660, %v644
        %v662 = vpop.permute.xlu0 %661
        %663 = vset.pattern.permute.xlu0 0
        %664 = vperm.xlu0 %663, %v645
        %v665 = vpop.permute.xlu0 %664
        %666 = vset.pattern.permute.xlu0 0
        %667 = vperm.xlu0 %666, %v646
        %v668 = vpop.permute.xlu0 %667
        %669 = vset.pattern.permute.xlu0 0
        %670 = vperm.xlu0 %669, %v647
        %v671 = vpop.permute.xlu0 %670
        %672 = vset.pattern.permute.xlu0 0
        %673 = vperm.xlu0 %672, %v648
        %v674 = vpop.permute.xlu0 %673
        %675 = vset.pattern.permute.xlu0 0
        %676 = vperm.xlu0 %675, %v649
        %v677 = vpop.permute.xlu0 %676
        %678 = vset.pattern.permute.xlu0 0
        %679 = vperm.xlu0 %678, %v650
        %v680 = vpop.permute.xlu0 %679
        %681 = vset.pattern.permute.xlu0 0
        %682 = vperm.xlu0 %681, %v651
        %v683 = vpop.permute.xlu0 %682
        %684 = vset.pattern.permute.xlu0 0
        %685 = vperm.xlu0 %684, %v652
        %v686 = vpop.permute.xlu0 %685
        %687 = vset.pattern.permute.xlu0 0
        %688 = vperm.xlu0 %687, %v653
        %v689 = vpop.permute.xlu0 %688
        %690 = vset.pattern.permute.xlu0 0
        %691 = vperm.xlu0 %690, %v654
        %v692 = vpop.permute.xlu0 %691
        %693 = vset.pattern.permute.xlu0 0
        %694 = vperm.xlu0 %693, %v655
        %v695 = vpop.permute.xlu0 %694
        %696 = vset.pattern.permute.xlu0 0
        %697 = vperm.xlu0 %696, %v656
        %v698 = vpop.permute.xlu0 %697
        %699 = vset.pattern.permute.xlu0 0
        %700 = vperm.xlu0 %699, %v657
        %v701 = vpop.permute.xlu0 %700
        %702 = vset.pattern.permute.xlu0 0
        %703 = vperm.xlu0 %702, %v658
        %v704 = vpop.permute.xlu0 %703
        %705 = vset.pattern.permute.xlu0 0
        %706 = vperm.xlu0 %705, %v659
        %v707 = vpop.permute.xlu0 %706
        %vm708 = vcmp.eq.s32.totalorder %v662, %v396
        %vm709 = vcmp.eq.s32.totalorder %v662, %v397
        %vm710 = vcmp.eq.s32.totalorder %v665, %v396
        %vm711 = vcmp.eq.s32.totalorder %v665, %v397
        %vm712 = vcmp.eq.s32.totalorder %v668, %v396
        %vm713 = vcmp.eq.s32.totalorder %v668, %v397
        %vm714 = vcmp.eq.s32.totalorder %v671, %v396
        %vm715 = vcmp.eq.s32.totalorder %v671, %v397
        %vm716 = vcmp.eq.s32.totalorder %v674, %v396
        %vm717 = vcmp.eq.s32.totalorder %v674, %v397
        %vm718 = vcmp.eq.s32.totalorder %v677, %v396
        %vm719 = vcmp.eq.s32.totalorder %v677, %v397
        %vm720 = vcmp.eq.s32.totalorder %v680, %v396
        %vm721 = vcmp.eq.s32.totalorder %v680, %v397
        %vm722 = vcmp.eq.s32.totalorder %v683, %v396
        %vm723 = vcmp.eq.s32.totalorder %v683, %v397
        %vm724 = vcmp.eq.s32.totalorder %v686, %v396
        %vm725 = vcmp.eq.s32.totalorder %v686, %v397
        %vm726 = vcmp.eq.s32.totalorder %v689, %v396
        %vm727 = vcmp.eq.s32.totalorder %v689, %v397
        %vm728 = vcmp.eq.s32.totalorder %v692, %v396
        %vm729 = vcmp.eq.s32.totalorder %v692, %v397
        %vm730 = vcmp.eq.s32.totalorder %v695, %v396
        %vm731 = vcmp.eq.s32.totalorder %v695, %v397
        %vm732 = vcmp.eq.s32.totalorder %v698, %v396
        %vm733 = vcmp.eq.s32.totalorder %v698, %v397
        %vm734 = vcmp.eq.s32.totalorder %v701, %v396
        %vm735 = vcmp.eq.s32.totalorder %v701, %v397
        %vm736 = vcmp.eq.s32.totalorder %v704, %v396
        %vm737 = vcmp.eq.s32.totalorder %v704, %v397
        %vm738 = vcmp.eq.s32.totalorder %v707, %v396
        %vm739 = vcmp.eq.s32.totalorder %v707, %v397
        %v740 = vsel %vm708, 1, 0
        %v741 = vsel %vm709, 1, 0
        %v742 = vsel %vm710, 1, 0
        %v743 = vsel %vm711, 1, 0
        %v744 = vsel %vm712, 1, 0
        %v745 = vsel %vm713, 1, 0
        %v746 = vsel %vm714, 1, 0
        %v747 = vsel %vm715, 1, 0
        %v748 = vsel %vm716, 1, 0
        %v749 = vsel %vm717, 1, 0
        %v750 = vsel %vm718, 1, 0
        %v751 = vsel %vm719, 1, 0
        %v752 = vsel %vm720, 1, 0
        %v753 = vsel %vm721, 1, 0
        %v754 = vsel %vm722, 1, 0
        %v755 = vsel %vm723, 1, 0
        %v756 = vsel %vm724, 1, 0
        %v757 = vsel %vm725, 1, 0
        %v758 = vsel %vm726, 1, 0
        %v759 = vsel %vm727, 1, 0
        %v760 = vsel %vm728, 1, 0
        %v761 = vsel %vm729, 1, 0
        %v762 = vsel %vm730, 1, 0
        %v763 = vsel %vm731, 1, 0
        %v764 = vsel %vm732, 1, 0
        %v765 = vsel %vm733, 1, 0
        %v766 = vsel %vm734, 1, 0
        %v767 = vsel %vm735, 1, 0
        %v768 = vsel %vm736, 1, 0
        %v769 = vsel %vm737, 1, 0
        %v770 = vsel %vm738, 1, 0
        %v771 = vsel %vm739, 1, 0
        %v772 = vcvt.s32.f32 %v740
        %v773 = vcvt.s32.f32 %v741
        %v774 = vcvt.s32.f32 %v742
        %v775 = vcvt.s32.f32 %v743
        %v776 = vcvt.s32.f32 %v744
        %v777 = vcvt.s32.f32 %v745
        %v778 = vcvt.s32.f32 %v746
        %v779 = vcvt.s32.f32 %v747
        %v780 = vcvt.s32.f32 %v748
        %v781 = vcvt.s32.f32 %v749
        %v782 = vcvt.s32.f32 %v750
        %v783 = vcvt.s32.f32 %v751
        %v784 = vcvt.s32.f32 %v752
        %v785 = vcvt.s32.f32 %v753
        %v786 = vcvt.s32.f32 %v754
        %v787 = vcvt.s32.f32 %v755
        %v788 = vcvt.s32.f32 %v756
        %v789 = vcvt.s32.f32 %v757
        %v790 = vcvt.s32.f32 %v758
        %v791 = vcvt.s32.f32 %v759
        %v792 = vcvt.s32.f32 %v760
        %v793 = vcvt.s32.f32 %v761
        %v794 = vcvt.s32.f32 %v762
        %v795 = vcvt.s32.f32 %v763
        %v796 = vcvt.s32.f32 %v764
        %v797 = vcvt.s32.f32 %v765
        %v798 = vcvt.s32.f32 %v766
        %v799 = vcvt.s32.f32 %v767
        %v800 = vcvt.s32.f32 %v768
        %v801 = vcvt.s32.f32 %v769
        %v802 = vcvt.s32.f32 %v770
        %v803 = vcvt.s32.f32 %v771
        %v804 = vpack.c.bf16 %v774, %v772
        %v805 = vpack.c.bf16 %v775, %v773
        %v806 = vpack.c.bf16 %v778, %v776
        %v807 = vpack.c.bf16 %v779, %v777
        %v808 = vpack.c.bf16 %v782, %v780
        %v809 = vpack.c.bf16 %v783, %v781
        %v810 = vpack.c.bf16 %v786, %v784
        %v811 = vpack.c.bf16 %v787, %v785
        %v812 = vpack.c.bf16 %v790, %v788
        %v813 = vpack.c.bf16 %v791, %v789
        %v814 = vpack.c.bf16 %v794, %v792
        %v815 = vpack.c.bf16 %v795, %v793
        %v816 = vpack.c.bf16 %v798, %v796
        %v817 = vpack.c.bf16 %v799, %v797
        %v818 = vpack.c.bf16 %v802, %v800
        %v819 = vpack.c.bf16 %v803, %v801
        %v820 = vld [vmem:[#allocation3] sm:$0xff]
        %v821 = vld [vmem:[%s388] sm:$0x3]
        %822 = vmatpush.bf16.msra.mxu0 %v818
        %823 = vmatpush.bf16.msra.mxu0 %v816
        %824 = vmatpush.bf16.msra.mxu0 %v814
        %825 = vmatpush.bf16.msra.mxu0 %v812
        %826 = vmatpush.bf16.msra.mxu0 %v810
        %827 = vmatpush.bf16.msra.mxu0 %v808
        %828 = vmatpush.bf16.msra.mxu0 %v806
        %829 = vmatpush.bf16.msra.mxu0 %v804
        %830 = vmatmul.bf16.gmra.mxu0 %v821
        %v831 = vpop.f32.mrf.mxu0
        %v832 = vadd.f32 0.0, %v831
        %v833 = vpop.f32.mrf.mxu0
        %834 = vdwg.mxu0
        %835 = vmatpush.bf16.msra.mxu0 %v819
        %836 = vmatpush.bf16.msra.mxu0 %v817
        %837 = vmatpush.bf16.msra.mxu0 %v815
        %838 = vmatpush.bf16.msra.mxu0 %v813
        %839 = vmatpush.bf16.msra.mxu0 %v811
        %840 = vmatpush.bf16.msra.mxu0 %v809
        %841 = vmatpush.bf16.msra.mxu0 %v807
        %842 = vmatpush.bf16.msra.mxu0 %v805
        %843 = vmatmul.bf16.gmra.mxu0 %v821
        %v844 = vpop.f32.mrf.mxu0
        %v845 = vadd.f32 0.0, %v844
        %v846 = vpop.f32.mrf.mxu0
        %847 = vdwg.mxu0
        %v850 = vrot.slane %v845, 4
        %v851 = vsel %vm623, %v832, %v850
        %v853 = vadd.f32 %v820, %v851
        %854 = vst [vmem:[#allocation3] sm:$0xff] %v853
        // Predicated region
        $region41: #{tpu_custom_call.1} parent=35 // pred_check
          %p855 = pneg %p389
        $region42: #{tpu_custom_call.1} parent=35 // pred_check_branch
          %857 = sbr.rel (%p855) target = $region44
        $region43: #{tpu_custom_call.1} parent=35 // pred_region
          %v858 = vld [vmem:[#allocation2] sm:$0xff]
          %v859 = vadd.f32 %v858, 1e-09
          %v860 = vrcp.pop %v859
          %v862 = vrot.slane %v860, 6
          %v864 = vmul.f32 %v858, %v862
          %v865 = vmul.f32 %v864, 0.5
          %v866 = vmul.f32 %v865, %v865
          %v868 = vperm.slane %v866, 2
          %v869 = vperm.slane %v866, 6
          %vm872 = vcmask 1040384
          %v873 = vsel %vm872, %v868, 0.0
          %v874 = vsel %vm872, %v869, 0.0
          %v875 = vadd.f32 %v873, %v874
          %876 = vadd.xlane.f32.xlu0 %v875
          %v877 = vpop.xlane.xlu0 %876
          %v878 = vrot.slane %v877, 4
          %v879 = vadd.f32 %v877, %v878
          %v880 = vrot.slane %v879, 2
          %v881 = vadd.f32 %v879, %v880
          %v882 = vrot.slane %v881, 1
          %v883 = vadd.f32 %v881, %v882
          %s884 = vtos %v883
          %v885 = vperm.slane %v866, 3
          %v886 = vperm.slane %v866, 7
          %v889 = vsel %vm872, %v885, 0.0
          %v890 = vsel %vm872, %v886, 0.0
          %v891 = vadd.f32 %v889, %v890
          %892 = vadd.xlane.f32.xlu0 %v891
          %v893 = vpop.xlane.xlu0 %892
          %v894 = vrot.slane %v893, 4
          %v895 = vadd.f32 %v893, %v894
          %v896 = vrot.slane %v895, 2
          %v897 = vadd.f32 %v895, %v896
          %v898 = vrot.slane %v897, 1
          %v899 = vadd.f32 %v897, %v898
          %s900 = vtos %v899
          %s901 = sadd.f32 %s884, %s900
          %v903 = vrot.slane %v858, 5
          %v904 = vrot.slane %v903, 4
          %v906 = vadd.f32 %v858, %v904
          %vm907 = vcmp.ne.f32.partialorder %v906, 0.0
          %v908 = vsel %vm907, 1, 0
          %v909 = vcvt.s32.f32 %v908
          %v911 = vperm.slane %v909, 0
          %v912 = vperm.slane %v909, 4
          %v915 = vsel %vm872, %v911, 0.0
          %v916 = vsel %vm872, %v912, 0.0
          %v917 = vadd.f32 %v915, %v916
          %918 = vadd.xlane.f32.xlu0 %v917
          %v919 = vpop.xlane.xlu0 %918
          %v920 = vrot.slane %v919, 4
          %v921 = vadd.f32 %v919, %v920
          %v922 = vrot.slane %v921, 2
          %v923 = vadd.f32 %v921, %v922
          %v924 = vrot.slane %v923, 1
          %v925 = vadd.f32 %v923, %v924
          %s926 = vtos %v925
          %v927 = vld [vmem:[#allocation3] sm:$0xff]
          %v928 = vadd.f32 %v927, 1e-09
          %v929 = vrcp.pop %v928
          %v931 = vrot.slane %v929, 6
          %v933 = vmul.f32 %v927, %v931
          %v934 = vmul.f32 %v933, 0.5
          %v935 = vmul.f32 %v934, %v934
          %v937 = vperm.slane %v935, 2
          %v938 = vperm.slane %v935, 6
          %v941 = vsel %vm872, %v937, 0.0
          %v942 = vsel %vm872, %v938, 0.0
          %v943 = vadd.f32 %v941, %v942
          %944 = vadd.xlane.f32.xlu0 %v943
          %v945 = vpop.xlane.xlu0 %944
          %v946 = vrot.slane %v945, 4
          %v947 = vadd.f32 %v945, %v946
          %v948 = vrot.slane %v947, 2
          %v949 = vadd.f32 %v947, %v948
          %v950 = vrot.slane %v949, 1
          %v951 = vadd.f32 %v949, %v950
          %s952 = vtos %v951
          %v953 = vperm.slane %v935, 3
          %v954 = vperm.slane %v935, 7
          %v957 = vsel %vm872, %v953, 0.0
          %v958 = vsel %vm872, %v954, 0.0
          %v959 = vadd.f32 %v957, %v958
          %960 = vadd.xlane.f32.xlu0 %v959
          %v961 = vpop.xlane.xlu0 %960
          %v962 = vrot.slane %v961, 4
          %v963 = vadd.f32 %v961, %v962
          %v964 = vrot.slane %v963, 2
          %v965 = vadd.f32 %v963, %v964
          %v966 = vrot.slane %v965, 1
          %v967 = vadd.f32 %v965, %v966
          %s968 = vtos %v967
          %s969 = sadd.f32 %s952, %s968
          %v971 = vrot.slane %v927, 5
          %v972 = vrot.slane %v971, 4
          %v974 = vadd.f32 %v927, %v972
          %vm975 = vcmp.ne.f32.partialorder %v974, 0.0
          %v976 = vsel %vm975, 1, 0
          %v977 = vcvt.s32.f32 %v976
          %v979 = vperm.slane %v977, 0
          %v980 = vperm.slane %v977, 4
          %v983 = vsel %vm872, %v979, 0.0
          %v984 = vsel %vm872, %v980, 0.0
          %v985 = vadd.f32 %v983, %v984
          %986 = vadd.xlane.f32.xlu0 %v985
          %v987 = vpop.xlane.xlu0 %986
          %v988 = vrot.slane %v987, 4
          %v989 = vadd.f32 %v987, %v988
          %v990 = vrot.slane %v989, 2
          %v991 = vadd.f32 %v989, %v990
          %v992 = vrot.slane %v991, 1
          %v993 = vadd.f32 %v991, %v992
          %s994 = vtos %v993
          %vm995 = vcmp.eq.s32.totalorder %v396, 0
          %v996 = vstv %s901
          %v997 = vsel %vm995, %v996, 0.0
          %v998 = vadd.f32 %v997, 0.0
          %vm999 = vcmp.eq.s32.totalorder %v396, 1
          %v1000 = vstv %s926
          %v1001 = vsel %vm999, %v1000, 0.0
          %v1002 = vadd.f32 %v998, %v1001
          %vm1003 = vcmp.eq.s32.totalorder %v396, 2
          %v1004 = vstv %s969
          %v1005 = vsel %vm1003, %v1004, 0.0
          %v1006 = vadd.f32 %v1002, %v1005
          %vm1007 = vcmp.eq.s32.totalorder %v396, 3
          %v1008 = vstv %s994
          %v1009 = vsel %vm1007, %v1008, 0.0
          %v1010 = vadd.f32 %v1006, %v1009
          %1011 = vst [vmem:[%s338] sm:$0x1] %v1010
        $region44: #{tpu_custom_call.1} parent=35 // pred_fallthru
          _
        %s1012 = sand.u32 %s176, 1
        %s1013 = scalar_lea.sflag [#allocation5], %s1012
        %s1014 = sand.u32 %s176, 1
        %s1015 = scalar_lea.vmem [#allocation4], %s1014
        // Predicated region
        $region45: #{tpu_custom_call.1} parent=35 // pred_check
          %p1016 = pneg %p186
        $region46: #{tpu_custom_call.1} parent=35 // pred_check_branch
          %1018 = sbr.rel (%p1016) target = $region48
        $region47: #{tpu_custom_call.1} parent=35 // pred_region
          %1020 = vsyncadd %s1013, 0
          %s1021 = sadd.s32 %s26, %s25
          %s1022 = smul.addr %s24, 2
          %s1023 = sadd.s32 %s1021, %s1022
          %s1024 = scalar_lea.hbm %s4, %s1023
          %s1026 = sshll.u32 %s1015, 4
          %s1027 = int_to_ptr.vmem [resolvable:$true] %s1026
          %s1028 = sshll.u32 %s1024, 4
          %s1029 = int_to_ptr.hbm [resolvable:$true] %s1028
          %1031 = dma.vmem_to_hbm [thread:$0]  %s1027, 16, %s1029, %s1013
        $region48: #{tpu_custom_call.1} parent=35 // pred_fallthru
          _
      $region36: #{tpu_custom_call.1} parent=5 // pred_fallthru
        _
      %p1032 = scmp.le.s32.totalorder 2, %s13
      // Predicated region
      $region49: #{tpu_custom_call.1} parent=5 // pred_check
        %p1033 = pneg %p1032
      $region50: #{tpu_custom_call.1} parent=5 // pred_check_branch
        %1035 = sbr.rel (%p1033) target = $region52
      $region51: #{tpu_custom_call.1} parent=5 // pred_region
        %s1036 = ssub.s32 %s13, 2
        // Predicated region
        $region53: #{tpu_custom_call.1} parent=51 // pred_check
          %p1037 = pneg %p192
        $region54: #{tpu_custom_call.1} parent=51 // pred_check_branch
          %1039 = sbr.rel (%p1037) target = $region56
        $region55: #{tpu_custom_call.1} parent=51 // pred_region
          %s1040 = sand.u32 %s177, 1
          %s1041 = scalar_lea.sflag [#allocation5], %s1040
          %s1042 = sand.u32 %s177, 1
          %s1043 = scalar_lea.vmem [#allocation4], %s1042
          %1045 = dma.done %s1041, 16
        $region56: #{tpu_custom_call.1} parent=51 // pred_fallthru
          _
      $region52: #{tpu_custom_call.1} parent=5 // pred_fallthru
        _
    $region6: #{tpu_custom_call.1} parent=1 // loop_footer
      %s17 = sadd.s32 1, %s13
    $region7: #{tpu_custom_call.1} parent=1 // loop_footer_branch
      %12 = sbr.rel target = $region3
    $region8: #{tpu_custom_call.1} parent=1 // loop_exit
      _
    %1046 = vsyncpa [#allocation5], 1
    %s1047 = scalar_lea.sflag [#allocation5], 1
    %1048 = vsyncpa %s1047, 1

</llo_original>
